<compile_context>
chip_gen: v5e
topology: v5e:2x2
jax: 0.10.0
libtpu: 0.0.40
codegen_flags: <defaults>
</compile_context>

<pallas_src>
import functools

import jax
import jax.numpy as jnp
from jax.experimental import pallas as pl
from jax.experimental.pallas import tpu as pltpu


# ------------------------- fused Pallas kernel -------------------------

def _fused_kernel(z_ref, wfc_ref, bfc_ref, a1_ref, g_ref, pool_ref, bcast_ref,
                  a2_ref, o_ref, *, ohow):
    # ---- fc + PReLU (result stays resident in VMEM/vregs) ----
    y = jnp.dot(z_ref[...], wfc_ref[...], preferred_element_type=jnp.float32)
    y = y + bfc_ref[...]
    a1 = a1_ref[0]
    y = jnp.where(y >= 0.0, y, a1 * y)                       # (B, Cin*H*W)

    # ---- ConvTranspose2d as one matmul with the precomputed operator G ----
    # (conv bias omitted: BatchNorm(affine=False) mean subtraction cancels it)
    t = jnp.dot(y, g_ref[...], preferred_element_type=jnp.float32)  # (B, N)

    # ---- BatchNorm2d(affine=False, batch stats) via MXU pooling ----
    # Channel c occupies the contiguous lane block [c*ohow, (c+1)*ohow).
    # pool  (N, Cout): column c = indicator of channel c's lanes
    # bcast (Cout, N): row c    = indicator of channel c's lanes
    inv_n = 1.0 / (t.shape[0] * ohow)                        # 1 / (B*OH*OW)
    bsum = jnp.sum(t, axis=0, keepdims=True)                 # (1, N)  batch sum
    bsq = jnp.sum(t * t, axis=0, keepdims=True)              # (1, N)
    mean_c = jnp.dot(bsum, pool_ref[...],
                     preferred_element_type=jnp.float32) * inv_n       # (1, Cout)
    msq_c = jnp.dot(bsq, pool_ref[...],
                    preferred_element_type=jnp.float32) * inv_n        # (1, Cout)
    rstd_c = jax.lax.rsqrt(msq_c - mean_c * mean_c + 1e-5)   # biased var, eps=1e-5
    mean_l = jnp.dot(mean_c, bcast_ref[...],
                     preferred_element_type=jnp.float32)                # (1, N)
    rstd_l = jnp.dot(rstd_c, bcast_ref[...],
                     preferred_element_type=jnp.float32)                # (1, N)

    # ---- normalize + PReLU, single full-width lane-dense store ----
    nb = (t - mean_l) * rstd_l
    a2 = a2_ref[0]
    o_ref[...] = jnp.where(nb >= 0.0, nb, a2 * nb)


# ------------------------- weight prep (one-time, not per-forward glue) ----

def prepare_params(params, *, in_channels, out_channels, img_size, ks, stride,
                   padding):
    """Builds the ConvTranspose linear operator G, BN channel operators, fc."""
    H, W = img_size
    Cin, Cout = in_channels, out_channels
    OH = (H - 1) * stride - 2 * padding + ks
    OW = (W - 1) * stride - 2 * padding + ks
    w = params["convt_w"].astype(jnp.float32)                # (Cin, Cout, KH, KW)

    # out[b,co,oh,ow] = sum_{ci,ih,iw} x[b,ci,ih,iw] * w[ci,co,kh,kw]
    #   with kh = oh - ih*stride + padding, kw = ow - iw*stride + padding
    ih = jnp.arange(H)
    oh = jnp.arange(OH)
    kh = oh[None, :] - ih[:, None] * stride + padding        # (H, OH)
    vh = (kh >= 0) & (kh < ks)
    iw = jnp.arange(W)
    ow = jnp.arange(OW)
    kw = ow[None, :] - iw[:, None] * stride + padding        # (W, OW)
    vw = (kw >= 0) & (kw < ks)

    g = w[:, :, jnp.clip(kh, 0, ks - 1), :]                  # (Cin,Cout,H,OH,KW)
    g = g[:, :, :, :, jnp.clip(kw, 0, ks - 1)]               # (Cin,Cout,H,OH,W,OW)
    mask = (vh[:, :, None, None] & vw[None, None, :, :]).astype(jnp.float32)
    g = g * mask[None, None]
    g = g.transpose(0, 2, 4, 1, 3, 5).reshape(Cin * H * W, Cout * OH * OW)

    # BatchNorm per-channel pooling / broadcast operators (block indicator).
    N = Cout * OH * OW
    chan = jnp.arange(N) // (OH * OW)
    pool = (chan[:, None] == jnp.arange(Cout)[None, :]).astype(jnp.float32)  # (N,Cout)
    bcast = pool.T                                                           # (Cout,N)

    return dict(
        fc_w=params["fc_w"].astype(jnp.float32),             # (L, Cin*H*W)
        fc_b=params["fc_b"].reshape(1, -1).astype(jnp.float32),
        prelu1=params["prelu1"].astype(jnp.float32),
        G=g,                                                 # (Cin*H*W, N)
        pool=pool,
        bcast=bcast,
        prelu2=params["prelu2"].astype(jnp.float32),
        out_dims=(Cout, OH, OW),
    )


# ------------------------- forward: exactly one pallas_call ----------------

def conv_transpose_block(z, prep):
    B = z.shape[0]
    Cout, OH, OW = prep["out_dims"]
    N = Cout * OH * OW

    vmem = pl.BlockSpec(memory_space=pltpu.MemorySpace.VMEM)
    smem = pl.BlockSpec(memory_space=pltpu.MemorySpace.SMEM)
    kern = functools.partial(_fused_kernel, ohow=OH * OW)

    out2d = pl.pallas_call(
        kern,
        out_shape=jax.ShapeDtypeStruct((B, N), jnp.float32),
        in_specs=[vmem, vmem, vmem, smem, vmem, vmem, vmem, smem],
        out_specs=vmem,
    )(z, prep["fc_w"], prep["fc_b"], prep["prelu1"], prep["G"],
      prep["pool"], prep["bcast"], prep["prelu2"])

    # metadata-only reshape back to PyTorch NCHW (no transpose needed)
    return out2d.reshape(B, Cout, OH, OW)


# ------------------------- pure-JAX reference -------------------------

def reference(z, params, *, in_channels, img_size, ks, stride, padding):
    B = z.shape[0]
    H, W = img_size
    y = z @ params["fc_w"] + params["fc_b"]
    a1 = params["prelu1"][0]
    y = jnp.where(y >= 0.0, y, a1 * y)
    x = y.reshape(B, in_channels, H, W)

    ct_w = params["convt_w"]                                     # (Cin,Cout,KH,KW)
    w_corr = jnp.flip(ct_w, axis=(2, 3)).transpose(1, 0, 2, 3)   # (Cout,Cin,KH,KW)
    pad = ks - 1 - padding
    out = jax.lax.conv_general_dilated(
        x, w_corr, window_strides=(1, 1),
        padding=[(pad, pad), (pad, pad)], lhs_dilation=(stride, stride),
        dimension_numbers=("NCHW", "OIHW", "NCHW"))
    out = out + params["convt_b"].reshape(1, -1, 1, 1)

    mean = out.mean(axis=(0, 2, 3), keepdims=True)
    var = ((out - mean) ** 2).mean(axis=(0, 2, 3), keepdims=True)
    out = (out - mean) / jnp.sqrt(var + 1e-5)
    a2 = params["prelu2"][0]
    return jnp.where(out >= 0.0, out, a2 * out)


# ------------------------- main -------------------------

if __name__ == "__main__":
    B, in_latent = 2, 16
    in_channels, out_channels = 4, 4
    img_size = (8, 8)
    ks, stride, padding = 4, 2, 1
    H, W = img_size
    F = in_channels * H * W

    key = jax.random.PRNGKey(0)
    k1, k2, k3, k4, k5 = jax.random.split(key, 5)
    params = dict(
        fc_w=0.1 * jax.random.normal(k1, (in_latent, F), jnp.float32),
        fc_b=0.1 * jax.random.normal(k2, (F,), jnp.float32),
        prelu1=jnp.full((1,), 0.25, jnp.float32),       # nn.PReLU() default init
        convt_w=0.1 * jax.random.normal(k3, (in_channels, out_channels, ks, ks),
                                        jnp.float32),
        convt_b=0.1 * jax.random.normal(k4, (out_channels,), jnp.float32),
        prelu2=jnp.full((1,), 0.25, jnp.float32),
    )
    z = jax.random.normal(k5, (B, in_latent), jnp.float32)

    # one-time weight prep (outside the forward path)
    prep = prepare_params(params, in_channels=in_channels,
                          out_channels=out_channels, img_size=img_size,
                          ks=ks, stride=stride, padding=padding)
    prep = jax.tree_util.tree_map(
        lambda x: jax.block_until_ready(x) if isinstance(x, jax.Array) else x,
        prep)

    fwd = jax.jit(lambda zz: conv_transpose_block(zz, prep))
    out = jax.block_until_ready(fwd(z))

    OH = (H - 1) * stride - 2 * padding + ks
    assert out.shape == (B, out_channels, OH, OH), out.shape

    ref = reference(z, params, in_channels=in_channels, img_size=img_size,
                    ks=ks, stride=stride, padding=padding)
    err = float(jnp.max(jnp.abs(out - ref)))
    assert jnp.allclose(out, ref, rtol=1e-3, atol=1e-3), f"max abs err {err}"

    print("KERNEL_OK")
</pallas_src>

<mosaic_0001>
module attributes {stable_mosaic.version = 11 : i64} {
  func.func @_fused_kernel(%arg0: memref<2x16xf32, #tpu.memory_space<vmem>>, %arg1: memref<16x256xf32, #tpu.memory_space<vmem>>, %arg2: memref<1x256xf32, #tpu.memory_space<vmem>>, %arg3: memref<1xf32, #tpu.memory_space<smem>>, %arg4: memref<256x1024xf32, #tpu.memory_space<vmem>>, %arg5: memref<1024x4xf32, #tpu.memory_space<vmem>>, %arg6: memref<4x1024xf32, #tpu.memory_space<vmem>>, %arg7: memref<1xf32, #tpu.memory_space<smem>>, %arg8: memref<2x1024xf32, #tpu.memory_space<vmem>>) attributes {dimension_semantics = [], scalar_prefetch = 0 : i64, scratch_operands = 0 : i64, tpu.core_type = #tpu.core_type<tc>} {
    %c0 = arith.constant 0 : index
    %c0_0 = arith.constant 0 : index
    %0 = vector.load %arg0[%c0, %c0_0] : memref<2x16xf32, #tpu.memory_space<vmem>>, vector<2x16xf32>
    %c0_1 = arith.constant 0 : index
    %c0_2 = arith.constant 0 : index
    %1 = vector.load %arg1[%c0_1, %c0_2] : memref<16x256xf32, #tpu.memory_space<vmem>>, vector<16x256xf32>
    %cst = arith.constant dense<0.000000e+00> : vector<2x256xf32>
    %2 = tpu.matmul %0, %1, %cst {dimension_numbers = #tpu.dot_dimension_numbers<[1], [0], [0], [1], [0, 0, 1, 1], [], []>} : vector<2x16xf32>, vector<16x256xf32>, vector<2x256xf32> -> vector<2x256xf32>
    %c0_3 = arith.constant 0 : index
    %c0_4 = arith.constant 0 : index
    %3 = vector.load %arg2[%c0_3, %c0_4] : memref<1x256xf32, #tpu.memory_space<vmem>>, vector<1x256xf32>
    %4 = vector.broadcast %3 : vector<1x256xf32> to vector<2x256xf32>
    %5 = arith.addf %2, %4 : vector<2x256xf32>
    %c0_5 = arith.constant 0 : index
    %6 = memref.load %arg3[%c0_5] : memref<1xf32, #tpu.memory_space<smem>>
    %cst_6 = arith.constant 0.000000e+00 : f32
    %7 = vector.broadcast %cst_6 : f32 to vector<2x256xf32>
    %8 = arith.cmpf oge, %5, %7 : vector<2x256xf32>
    %9 = vector.broadcast %6 : f32 to vector<2x256xf32>
    %10 = arith.mulf %9, %5 : vector<2x256xf32>
    %11 = arith.select %8, %5, %10 : vector<2x256xi1>, vector<2x256xf32>
    %c0_7 = arith.constant 0 : index
    %c0_8 = arith.constant 0 : index
    %12 = vector.load %arg4[%c0_7, %c0_8] : memref<256x1024xf32, #tpu.memory_space<vmem>>, vector<256x1024xf32>
    %cst_9 = arith.constant dense<0.000000e+00> : vector<2x1024xf32>
    %13 = tpu.matmul %11, %12, %cst_9 {dimension_numbers = #tpu.dot_dimension_numbers<[1], [0], [0], [1], [0, 0, 1, 1], [], []>} : vector<2x256xf32>, vector<256x1024xf32>, vector<2x1024xf32> -> vector<2x1024xf32>
    %cst_10 = arith.constant dense<0.000000e+00> : vector<1024xf32>
    %14 = vector.multi_reduction <add>, %13, %cst_10 [0] : vector<2x1024xf32> to vector<1024xf32>
    %15 = vector.shape_cast %14 : vector<1024xf32> to vector<1x1024xf32>
    %16 = arith.mulf %13, %13 : vector<2x1024xf32>
    %cst_11 = arith.constant dense<0.000000e+00> : vector<1024xf32>
    %17 = vector.multi_reduction <add>, %16, %cst_11 [0] : vector<2x1024xf32> to vector<1024xf32>
    %18 = vector.shape_cast %17 : vector<1024xf32> to vector<1x1024xf32>
    %c0_12 = arith.constant 0 : index
    %c0_13 = arith.constant 0 : index
    %19 = vector.load %arg5[%c0_12, %c0_13] : memref<1024x4xf32, #tpu.memory_space<vmem>>, vector<1024x4xf32>
    %cst_14 = arith.constant dense<0.000000e+00> : vector<1x4xf32>
    %20 = tpu.matmul %15, %19, %cst_14 {dimension_numbers = #tpu.dot_dimension_numbers<[1], [0], [0], [1], [0, 0, 1, 1], [], []>} : vector<1x1024xf32>, vector<1024x4xf32>, vector<1x4xf32> -> vector<1x4xf32>
    %cst_15 = arith.constant 0.001953125 : f32
    %21 = vector.broadcast %cst_15 : f32 to vector<1x4xf32>
    %22 = arith.mulf %20, %21 : vector<1x4xf32>
    %c0_16 = arith.constant 0 : index
    %c0_17 = arith.constant 0 : index
    %23 = vector.load %arg5[%c0_16, %c0_17] : memref<1024x4xf32, #tpu.memory_space<vmem>>, vector<1024x4xf32>
    %cst_18 = arith.constant dense<0.000000e+00> : vector<1x4xf32>
    %24 = tpu.matmul %18, %23, %cst_18 {dimension_numbers = #tpu.dot_dimension_numbers<[1], [0], [0], [1], [0, 0, 1, 1], [], []>} : vector<1x1024xf32>, vector<1024x4xf32>, vector<1x4xf32> -> vector<1x4xf32>
    %cst_19 = arith.constant 0.001953125 : f32
    %25 = vector.broadcast %cst_19 : f32 to vector<1x4xf32>
    %26 = arith.mulf %24, %25 : vector<1x4xf32>
    %27 = arith.mulf %22, %22 : vector<1x4xf32>
    %28 = arith.subf %26, %27 : vector<1x4xf32>
    %cst_20 = arith.constant 9.99999974E-6 : f32
    %29 = vector.broadcast %cst_20 : f32 to vector<1x4xf32>
    %30 = arith.addf %28, %29 : vector<1x4xf32>
    %31 = math.rsqrt %30 : vector<1x4xf32>
    %c0_21 = arith.constant 0 : index
    %c0_22 = arith.constant 0 : index
    %32 = vector.load %arg6[%c0_21, %c0_22] : memref<4x1024xf32, #tpu.memory_space<vmem>>, vector<4x1024xf32>
    %cst_23 = arith.constant dense<0.000000e+00> : vector<1x1024xf32>
    %33 = tpu.matmul %22, %32, %cst_23 {dimension_numbers = #tpu.dot_dimension_numbers<[1], [0], [0], [1], [0, 0, 1, 1], [], []>} : vector<1x4xf32>, vector<4x1024xf32>, vector<1x1024xf32> -> vector<1x1024xf32>
    %c0_24 = arith.constant 0 : index
    %c0_25 = arith.constant 0 : index
    %34 = vector.load %arg6[%c0_24, %c0_25] : memref<4x1024xf32, #tpu.memory_space<vmem>>, vector<4x1024xf32>
    %cst_26 = arith.constant dense<0.000000e+00> : vector<1x1024xf32>
    %35 = tpu.matmul %31, %34, %cst_26 {dimension_numbers = #tpu.dot_dimension_numbers<[1], [0], [0], [1], [0, 0, 1, 1], [], []>} : vector<1x4xf32>, vector<4x1024xf32>, vector<1x1024xf32> -> vector<1x1024xf32>
    %36 = vector.broadcast %33 : vector<1x1024xf32> to vector<2x1024xf32>
    %37 = arith.subf %13, %36 : vector<2x1024xf32>
    %38 = vector.broadcast %35 : vector<1x1024xf32> to vector<2x1024xf32>
    %39 = arith.mulf %37, %38 : vector<2x1024xf32>
    %c0_27 = arith.constant 0 : index
    %40 = memref.load %arg7[%c0_27] : memref<1xf32, #tpu.memory_space<smem>>
    %cst_28 = arith.constant 0.000000e+00 : f32
    %41 = vector.broadcast %cst_28 : f32 to vector<2x1024xf32>
    %42 = arith.cmpf oge, %39, %41 : vector<2x1024xf32>
    %43 = vector.broadcast %40 : f32 to vector<2x1024xf32>
    %44 = arith.mulf %43, %39 : vector<2x1024xf32>
    %45 = arith.select %42, %39, %44 : vector<2x1024xi1>, vector<2x1024xf32>
    %c0_29 = arith.constant 0 : index
    %c0_30 = arith.constant 0 : index
    %46 = vector.load %arg8[%c0_29, %c0_30] : memref<2x1024xf32, #tpu.memory_space<vmem>>, vector<2x1024xf32>
    tpu.vector_store %arg8[%c0_29, %c0_30], %45 {strides = array<i32>} : memref<2x1024xf32, #tpu.memory_space<vmem>>, vector<2x1024xf32>,
    return
  }
}

</mosaic_0001>

<llo_original>
// kernel: _lambda_.1
$region0: #{_lambda_.1}
  #allocation0 [shape = 'u32[]', space=smem, size = 0x4, offset = 0x4, fixed_abs, tag = 'smem constant byte address 0x4 - core index']
  #allocation1 [shape = 'u32[72,128]{1,0:T(1,128)}', space=vmem, size = 0x9000, scoped, tag = 'internal scratch']
  #allocation2 [shape = 'f32[1]{0:T(128)S(6)}', space=smem, size = 0x200, scoped, tag = 'scoped memory for _lambda_.1']
  #allocation3 [shape = 'f32[1]{0:T(128)S(6)}', space=smem, size = 0x200, scoped, tag = 'scoped memory for _lambda_.1']
  %s0 = inlined_call_operand.hbm [shape: f32[2,16], index: 0, kind: input, shape index: {}]
  %s1 = inlined_call_operand.hbm [shape: f32[16,256], index: 1, kind: input, shape index: {}]
  %s2 = inlined_call_operand.hbm [shape: f32[1,256], index: 2, kind: input, shape index: {}]
  %s3 = inlined_call_operand.<no memory space> [shape: f32[1], index: 3, kind: input, shape index: {}, may-alias: {3,7}]
  %s4 = inlined_call_operand.hbm [shape: f32[256,1024], index: 4, kind: input, shape index: {}]
  %s5 = inlined_call_operand.hbm [shape: f32[1024,4], index: 5, kind: input, shape index: {}]
  %s6 = inlined_call_operand.hbm [shape: f32[4,1024], index: 6, kind: input, shape index: {}]
  %s7 = inlined_call_operand.<no memory space> [shape: f32[1], index: 7, kind: input, shape index: {}, may-alias: {3,7}]
  %s8 = inlined_call_operand.vmem [shape: f32[2,1024], index: 8, kind: output, shape index: {}]
  %s9 = sld [smem:[#allocation0]]
  $region66: #{_lambda_.1} parent=0
    _
  %s11 = ssub.s32 1, %s9
  %s12 = scalar_select 0, %s11, %s9
  %13 = sst [smem:[#allocation2]] %s3
  %14 = sst [smem:[#allocation3]] %s7
  $region1: #{_lambda_.1} parent=0
    #allocation4 [shape = 'u8[1024]{0}', space=vmem, size = 0x400, scoped, tag = 'input window, operand 0, single buffered']
    #allocation5 [shape = 's32[1]{0}', space=sflag, size = 0x4, scoped, tag = 'scoped memory for _lambda_.1']
    #allocation6 [shape = 'u8[16384]{0}', space=vmem, size = 0x4000, scoped, tag = 'input window, operand 1, single buffered']
    #allocation7 [shape = 's32[1]{0}', space=sflag, size = 0x4, scoped, tag = 'scoped memory for _lambda_.1']
    #allocation8 [shape = 'u8[1024]{0}', space=vmem, size = 0x400, scoped, tag = 'input window, operand 2, single buffered']
    #allocation9 [shape = 'u8[1048576]{0}', space=vmem, size = 0x100000, scoped, tag = 'input window, operand 4, single buffered']
    #allocation10 [shape = 's32[1]{0}', space=sflag, size = 0x4, scoped, tag = 'scoped memory for _lambda_.1']
    #allocation11 [shape = 'u8[524288]{0}', space=vmem, size = 0x80000, scoped, tag = 'input window, operand 5, single buffered']
    #allocation12 [shape = 'u8[16384]{0}', space=vmem, size = 0x4000, scoped, tag = 'input window, operand 6, single buffered']
    #allocation13 [shape = 's32[1]{0}', space=sflag, size = 0x4, scoped, tag = 'scoped memory for _lambda_.1']
    %15 = vsyncpa [#allocation5], 0
    %16 = vsyncpa [#allocation7], 0
    %17 = vsyncpa [#allocation10], 0
    %18 = vsyncpa [#allocation13], 0
    // Predicated region
    $region2: #{_lambda_.1} parent=1 // pred_check
      _
    $region3: #{_lambda_.1} parent=1 // pred_check_branch
      %20 = sbr.rel (0) target = $region5
    $region4: #{_lambda_.1} parent=1 // pred_region
      %22 = vsyncadd [#allocation5], 0
      %s24 = sshll.u32 %s0, 4
      %s25 = int_to_ptr.hbm [resolvable:$true] %s24
      %s26 = sshll.u32 [#allocation4], 4
      %s27 = int_to_ptr.vmem [resolvable:$true] %s26
      %29 = dma.hbm_to_vmem [thread:$0]  %s25, 32, %s27, [#allocation5]
    $region5: #{_lambda_.1} parent=1 // pred_fallthru
      _
    // Predicated region
    $region6: #{_lambda_.1} parent=1 // pred_check
      _
    $region7: #{_lambda_.1} parent=1 // pred_check_branch
      %31 = sbr.rel (0) target = $region9
    $region8: #{_lambda_.1} parent=1 // pred_region
      %33 = vsyncadd [#allocation7], 0
      %s34 = sshll.u32 %s1, 4
      %s35 = int_to_ptr.hbm [resolvable:$true] %s34
      %s36 = sshll.u32 [#allocation6], 4
      %s37 = int_to_ptr.vmem [resolvable:$true] %s36
      %42 = dma.hbm_to_vmem [thread:$0]  %s35, 512, %s37, [#allocation7], 256, 256, 16
    $region9: #{_lambda_.1} parent=1 // pred_fallthru
      _
    // Predicated region
    $region10: #{_lambda_.1} parent=1 // pred_check
      _
    $region11: #{_lambda_.1} parent=1 // pred_check_branch
      %44 = sbr.rel (0) target = $region13
    $region12: #{_lambda_.1} parent=1 // pred_region
      %46 = vsyncadd [#allocation7], 0
      %s48 = sshll.u32 %s2, 4
      %s49 = int_to_ptr.hbm [resolvable:$true] %s48
      %s50 = sshll.u32 [#allocation8], 4
      %s51 = int_to_ptr.vmem [resolvable:$true] %s50
      %53 = dma.hbm_to_vmem [thread:$0]  %s49, 32, %s51, [#allocation7]
    $region13: #{_lambda_.1} parent=1 // pred_fallthru
      _
    // Predicated region
    $region14: #{_lambda_.1} parent=1 // pred_check
      _
    $region15: #{_lambda_.1} parent=1 // pred_check_branch
      %55 = sbr.rel (0) target = $region17
    $region16: #{_lambda_.1} parent=1 // pred_region
      _
    $region17: #{_lambda_.1} parent=1 // pred_fallthru
      _
    // Predicated region
    $region18: #{_lambda_.1} parent=1 // pred_check
      _
    $region19: #{_lambda_.1} parent=1 // pred_check_branch
      %57 = sbr.rel (0) target = $region21
    $region20: #{_lambda_.1} parent=1 // pred_region
      %59 = vsyncadd [#allocation10], 0
      %s60 = sshll.u32 %s4, 4
      %s61 = int_to_ptr.hbm [resolvable:$true] %s60
      %s62 = sshll.u32 [#allocation9], 4
      %s63 = int_to_ptr.vmem [resolvable:$true] %s62
      %68 = dma.hbm_to_vmem [thread:$0]  %s61, 32768, %s63, [#allocation10], 1024, 1024, 64
    $region21: #{_lambda_.1} parent=1 // pred_fallthru
      _
    // Predicated region
    $region22: #{_lambda_.1} parent=1 // pred_check
      _
    $region23: #{_lambda_.1} parent=1 // pred_check_branch
      %70 = sbr.rel (0) target = $region25
    $region24: #{_lambda_.1} parent=1 // pred_region
      %72 = vsyncadd [#allocation10], 0
      %s73 = sshll.u32 %s5, 4
      %s74 = int_to_ptr.hbm [resolvable:$true] %s73
      %s75 = sshll.u32 [#allocation11], 4
      %s76 = int_to_ptr.vmem [resolvable:$true] %s75
      %81 = dma.hbm_to_vmem [thread:$0]  %s74, 16384, %s76, [#allocation10], 128, 128, 8
    $region25: #{_lambda_.1} parent=1 // pred_fallthru
      _
    // Predicated region
    $region26: #{_lambda_.1} parent=1 // pred_check
      _
    $region27: #{_lambda_.1} parent=1 // pred_check_branch
      %83 = sbr.rel (0) target = $region29
    $region28: #{_lambda_.1} parent=1 // pred_region
      %85 = vsyncadd [#allocation13], 0
      %s87 = sshll.u32 %s6, 4
      %s88 = int_to_ptr.hbm [resolvable:$true] %s87
      %s89 = sshll.u32 [#allocation12], 4
      %s90 = int_to_ptr.vmem [resolvable:$true] %s89
      %92 = dma.hbm_to_vmem [thread:$0]  %s88, 512, %s90, [#allocation13]
    $region29: #{_lambda_.1} parent=1 // pred_fallthru
      _
    // Predicated region
    $region30: #{_lambda_.1} parent=1 // pred_check
      _
    $region31: #{_lambda_.1} parent=1 // pred_check_branch
      %94 = sbr.rel (0) target = $region33
    $region32: #{_lambda_.1} parent=1 // pred_region
      _
    $region33: #{_lambda_.1} parent=1 // pred_fallthru
      _
    // Predicated region
    $region34: #{_lambda_.1} parent=1 // pred_check
      _
    $region35: #{_lambda_.1} parent=1 // pred_check_branch
      %96 = sbr.rel (0) target = $region37
    $region36: #{_lambda_.1} parent=1 // pred_region
      %98 = dma.done [#allocation5], 32
    $region37: #{_lambda_.1} parent=1 // pred_fallthru
      _
    // Predicated region
    $region38: #{_lambda_.1} parent=1 // pred_check
      _
    $region39: #{_lambda_.1} parent=1 // pred_check_branch
      %100 = sbr.rel (0) target = $region41
    $region40: #{_lambda_.1} parent=1 // pred_region
      %102 = dma.done [#allocation7], 512
    $region41: #{_lambda_.1} parent=1 // pred_fallthru
      _
    // Predicated region
    $region42: #{_lambda_.1} parent=1 // pred_check
      _
    $region43: #{_lambda_.1} parent=1 // pred_check_branch
      %104 = sbr.rel (0) target = $region45
    $region44: #{_lambda_.1} parent=1 // pred_region
      %106 = dma.done [#allocation7], 32
    $region45: #{_lambda_.1} parent=1 // pred_fallthru
      _
    // Predicated region
    $region46: #{_lambda_.1} parent=1 // pred_check
      _
    $region47: #{_lambda_.1} parent=1 // pred_check_branch
      %108 = sbr.rel (0) target = $region49
    $region48: #{_lambda_.1} parent=1 // pred_region
      %110 = dma.done [#allocation10], 32768
    $region49: #{_lambda_.1} parent=1 // pred_fallthru
      _
    // Predicated region
    $region50: #{_lambda_.1} parent=1 // pred_check
      _
    $region51: #{_lambda_.1} parent=1 // pred_check_branch
      %112 = sbr.rel (0) target = $region53
    $region52: #{_lambda_.1} parent=1 // pred_region
      %114 = dma.done [#allocation10], 16384
    $region53: #{_lambda_.1} parent=1 // pred_fallthru
      _
    // Predicated region
    $region54: #{_lambda_.1} parent=1 // pred_check
      _
    $region55: #{_lambda_.1} parent=1 // pred_check_branch
      %116 = sbr.rel (0) target = $region57
    $region56: #{_lambda_.1} parent=1 // pred_region
      %118 = dma.done [#allocation13], 512
    $region57: #{_lambda_.1} parent=1 // pred_fallthru
      _
    %v119 = vld [vmem:[#allocation4] sm:$0x3]
    %v120 = vld [vmem:[#allocation6] sm:$0xff]
    %v121 = vld [vmem:[#allocation6 + $0x8] sm:$0xff]
    %v122 = vld [vmem:[#allocation6 + $0x10] sm:$0xff]
    %v123 = vld [vmem:[#allocation6 + $0x18] sm:$0xff]
    %v124 = vld [vmem:[#allocation8] sm:$0x3]
    %v126 = vperm.slane %v124, 0
    %v127 = vperm.slane %v124, 1
    %vm130 = vcmask 130048
    %v132 = vsel %vm130, %v119, 0
    %134 = vmatpush.msra.mxu0 0.0
    %135 = vmatpush.msra.mxu0 0.0
    %136 = vmatpush.msra.mxu0 0.0
    %137 = vmatpush.msra.mxu0 0.0
    %138 = vmatpush.msra.mxu0 0.0
    %139 = vmatpush.msra.mxu0 0.0
    %140 = vmatpush.msra.mxu0 0.0
    %141 = vmatpush.msra.mxu0 0.0
    %142 = vmatpush.msra.mxu0 0.0
    %143 = vmatpush.msra.mxu0 0.0
    %144 = vmatpush.msra.mxu0 0.0
    %145 = vmatpush.msra.mxu0 0.0
    %146 = vmatpush.msra.mxu0 0.0
    %147 = vmatpush.msra.mxu0 0.0
    %148 = vmatpush.msra.mxu0 %v122
    %149 = vmatpush.msra.mxu0 %v120
    %150 = vmatmul.f32.gmra.mxu0 %v132
    %v151 = vpop.f32.mrf.mxu0
    %v152 = vadd.f32 %v126, %v151
    %153 = vdwg.mxu0
    %154 = vmatpush.msra.mxu0 0.0
    %155 = vmatpush.msra.mxu0 0.0
    %156 = vmatpush.msra.mxu0 0.0
    %157 = vmatpush.msra.mxu0 0.0
    %158 = vmatpush.msra.mxu0 0.0
    %159 = vmatpush.msra.mxu0 0.0
    %160 = vmatpush.msra.mxu0 0.0
    %161 = vmatpush.msra.mxu0 0.0
    %162 = vmatpush.msra.mxu0 0.0
    %163 = vmatpush.msra.mxu0 0.0
    %164 = vmatpush.msra.mxu0 0.0
    %165 = vmatpush.msra.mxu0 0.0
    %166 = vmatpush.msra.mxu0 0.0
    %167 = vmatpush.msra.mxu0 0.0
    %168 = vmatpush.msra.mxu0 %v123
    %169 = vmatpush.msra.mxu0 %v121
    %170 = vmatmul.f32.gmra.mxu0 %v132
    %v171 = vpop.f32.mrf.mxu0
    %v172 = vadd.f32 %v127, %v171
    %173 = vdwg.mxu0
    %s174 = sld [smem:[#allocation2]]
    %vm175 = vcmp.ge.f32.partialorder %v152, 0.0
    %vm176 = vcmp.ge.f32.partialorder %v172, 0.0
    %v177 = vstv %s174
    %v178 = vmul.f32 %v177, %v152
    %v179 = vmul.f32 %v177, %v172
    %v180 = vsel %vm175, %v152, %v178
    %v181 = vsel %vm176, %v172, %v179
    %v182 = vld [vmem:[#allocation9] sm:$0xff]
    %v183 = vld [vmem:[#allocation9 + $0x8] sm:$0xff]
    %v184 = vld [vmem:[#allocation9 + $0x10] sm:$0xff]
    %v185 = vld [vmem:[#allocation9 + $0x18] sm:$0xff]
    %v186 = vld [vmem:[#allocation9 + $0x20] sm:$0xff]
    %v187 = vld [vmem:[#allocation9 + $0x28] sm:$0xff]
    %v188 = vld [vmem:[#allocation9 + $0x30] sm:$0xff]
    %v189 = vld [vmem:[#allocation9 + $0x38] sm:$0xff]
    %v190 = vld [vmem:[#allocation9 + $0x40] sm:$0xff]
    %v191 = vld [vmem:[#allocation9 + $0x48] sm:$0xff]
    %v192 = vld [vmem:[#allocation9 + $0x50] sm:$0xff]
    %v193 = vld [vmem:[#allocation9 + $0x58] sm:$0xff]
    %v194 = vld [vmem:[#allocation9 + $0x60] sm:$0xff]
    %v195 = vld [vmem:[#allocation9 + $0x68] sm:$0xff]
    %v196 = vld [vmem:[#allocation9 + $0x70] sm:$0xff]
    %v197 = vld [vmem:[#allocation9 + $0x78] sm:$0xff]
    %v198 = vld [vmem:[#allocation9 + $0x80] sm:$0xff]
    %v199 = vld [vmem:[#allocation9 + $0x88] sm:$0xff]
    %v200 = vld [vmem:[#allocation9 + $0x90] sm:$0xff]
    %v201 = vld [vmem:[#allocation9 + $0x98] sm:$0xff]
    %v202 = vld [vmem:[#allocation9 + $0xa0] sm:$0xff]
    %v203 = vld [vmem:[#allocation9 + $0xa8] sm:$0xff]
    %v204 = vld [vmem:[#allocation9 + $0xb0] sm:$0xff]
    %v205 = vld [vmem:[#allocation9 + $0xb8] sm:$0xff]
    %v206 = vld [vmem:[#allocation9 + $0xc0] sm:$0xff]
    %v207 = vld [vmem:[#allocation9 + $0xc8] sm:$0xff]
    %v208 = vld [vmem:[#allocation9 + $0xd0] sm:$0xff]
    %v209 = vld [vmem:[#allocation9 + $0xd8] sm:$0xff]
    %v210 = vld [vmem:[#allocation9 + $0xe0] sm:$0xff]
    %v211 = vld [vmem:[#allocation9 + $0xe8] sm:$0xff]
    %v212 = vld [vmem:[#allocation9 + $0xf0] sm:$0xff]
    %v213 = vld [vmem:[#allocation9 + $0xf8] sm:$0xff]
    %v214 = vld [vmem:[#allocation9 + $0x100] sm:$0xff]
    %v215 = vld [vmem:[#allocation9 + $0x108] sm:$0xff]
    %v216 = vld [vmem:[#allocation9 + $0x110] sm:$0xff]
    %v217 = vld [vmem:[#allocation9 + $0x118] sm:$0xff]
    %v218 = vld [vmem:[#allocation9 + $0x120] sm:$0xff]
    %v219 = vld [vmem:[#allocation9 + $0x128] sm:$0xff]
    %v220 = vld [vmem:[#allocation9 + $0x130] sm:$0xff]
    %v221 = vld [vmem:[#allocation9 + $0x138] sm:$0xff]
    %v222 = vld [vmem:[#allocation9 + $0x140] sm:$0xff]
    %v223 = vld [vmem:[#allocation9 + $0x148] sm:$0xff]
    %v224 = vld [vmem:[#allocation9 + $0x150] sm:$0xff]
    %v225 = vld [vmem:[#allocation9 + $0x158] sm:$0xff]
    %v226 = vld [vmem:[#allocation9 + $0x160] sm:$0xff]
    %v227 = vld [vmem:[#allocation9 + $0x168] sm:$0xff]
    %v228 = vld [vmem:[#allocation9 + $0x170] sm:$0xff]
    %v229 = vld [vmem:[#allocation9 + $0x178] sm:$0xff]
    %v230 = vld [vmem:[#allocation9 + $0x180] sm:$0xff]
    %v231 = vld [vmem:[#allocation9 + $0x188] sm:$0xff]
    %v232 = vld [vmem:[#allocation9 + $0x190] sm:$0xff]
    %v233 = vld [vmem:[#allocation9 + $0x198] sm:$0xff]
    %v234 = vld [vmem:[#allocation9 + $0x1a0] sm:$0xff]
    %v235 = vld [vmem:[#allocation9 + $0x1a8] sm:$0xff]
    %v236 = vld [vmem:[#allocation9 + $0x1b0] sm:$0xff]
    %v237 = vld [vmem:[#allocation9 + $0x1b8] sm:$0xff]
    %v238 = vld [vmem:[#allocation9 + $0x1c0] sm:$0xff]
    %v239 = vld [vmem:[#allocation9 + $0x1c8] sm:$0xff]
    %v240 = vld [vmem:[#allocation9 + $0x1d0] sm:$0xff]
    %v241 = vld [vmem:[#allocation9 + $0x1d8] sm:$0xff]
    %v242 = vld [vmem:[#allocation9 + $0x1e0] sm:$0xff]
    %v243 = vld [vmem:[#allocation9 + $0x1e8] sm:$0xff]
    %v244 = vld [vmem:[#allocation9 + $0x1f0] sm:$0xff]
    %v245 = vld [vmem:[#allocation9 + $0x1f8] sm:$0xff]
    %v246 = vld [vmem:[#allocation9 + $0x200] sm:$0xff]
    %v247 = vld [vmem:[#allocation9 + $0x208] sm:$0xff]
    %v248 = vld [vmem:[#allocation9 + $0x210] sm:$0xff]
    %v249 = vld [vmem:[#allocation9 + $0x218] sm:$0xff]
    %v250 = vld [vmem:[#allocation9 + $0x220] sm:$0xff]
    %v251 = vld [vmem:[#allocation9 + $0x228] sm:$0xff]
    %v252 = vld [vmem:[#allocation9 + $0x230] sm:$0xff]
    %v253 = vld [vmem:[#allocation9 + $0x238] sm:$0xff]
    %v254 = vld [vmem:[#allocation9 + $0x240] sm:$0xff]
    %v255 = vld [vmem:[#allocation9 + $0x248] sm:$0xff]
    %v256 = vld [vmem:[#allocation9 + $0x250] sm:$0xff]
    %v257 = vld [vmem:[#allocation9 + $0x258] sm:$0xff]
    %v258 = vld [vmem:[#allocation9 + $0x260] sm:$0xff]
    %v259 = vld [vmem:[#allocation9 + $0x268] sm:$0xff]
    %v260 = vld [vmem:[#allocation9 + $0x270] sm:$0xff]
    %v261 = vld [vmem:[#allocation9 + $0x278] sm:$0xff]
    %v262 = vld [vmem:[#allocation9 + $0x280] sm:$0xff]
    %v263 = vld [vmem:[#allocation9 + $0x288] sm:$0xff]
    %v264 = vld [vmem:[#allocation9 + $0x290] sm:$0xff]
    %v265 = vld [vmem:[#allocation9 + $0x298] sm:$0xff]
    %v266 = vld [vmem:[#allocation9 + $0x2a0] sm:$0xff]
    %v267 = vld [vmem:[#allocation9 + $0x2a8] sm:$0xff]
    %v268 = vld [vmem:[#allocation9 + $0x2b0] sm:$0xff]
    %v269 = vld [vmem:[#allocation9 + $0x2b8] sm:$0xff]
    %v270 = vld [vmem:[#allocation9 + $0x2c0] sm:$0xff]
    %v271 = vld [vmem:[#allocation9 + $0x2c8] sm:$0xff]
    %v272 = vld [vmem:[#allocation9 + $0x2d0] sm:$0xff]
    %v273 = vld [vmem:[#allocation9 + $0x2d8] sm:$0xff]
    %v274 = vld [vmem:[#allocation9 + $0x2e0] sm:$0xff]
    %v275 = vld [vmem:[#allocation9 + $0x2e8] sm:$0xff]
    %v276 = vld [vmem:[#allocation9 + $0x2f0] sm:$0xff]
    %v277 = vld [vmem:[#allocation9 + $0x2f8] sm:$0xff]
    %v278 = vld [vmem:[#allocation9 + $0x300] sm:$0xff]
    %v279 = vld [vmem:[#allocation9 + $0x308] sm:$0xff]
    %v280 = vld [vmem:[#allocation9 + $0x310] sm:$0xff]
    %v281 = vld [vmem:[#allocation9 + $0x318] sm:$0xff]
    %v282 = vld [vmem:[#allocation9 + $0x320] sm:$0xff]
    %v283 = vld [vmem:[#allocation9 + $0x328] sm:$0xff]
    %v284 = vld [vmem:[#allocation9 + $0x330] sm:$0xff]
    %v285 = vld [vmem:[#allocation9 + $0x338] sm:$0xff]
    %v286 = vld [vmem:[#allocation9 + $0x340] sm:$0xff]
    %v287 = vld [vmem:[#allocation9 + $0x348] sm:$0xff]
    %v288 = vld [vmem:[#allocation9 + $0x350] sm:$0xff]
    %v289 = vld [vmem:[#allocation9 + $0x358] sm:$0xff]
    %v290 = vld [vmem:[#allocation9 + $0x360] sm:$0xff]
    %v291 = vld [vmem:[#allocation9 + $0x368] sm:$0xff]
    %v292 = vld [vmem:[#allocation9 + $0x370] sm:$0xff]
    %v293 = vld [vmem:[#allocation9 + $0x378] sm:$0xff]
    %v294 = vld [vmem:[#allocation9 + $0x380] sm:$0xff]
    %v295 = vld [vmem:[#allocation9 + $0x388] sm:$0xff]
    %v296 = vld [vmem:[#allocation9 + $0x390] sm:$0xff]
    %v297 = vld [vmem:[#allocation9 + $0x398] sm:$0xff]
    %v298 = vld [vmem:[#allocation9 + $0x3a0] sm:$0xff]
    %v299 = vld [vmem:[#allocation9 + $0x3a8] sm:$0xff]
    %v300 = vld [vmem:[#allocation9 + $0x3b0] sm:$0xff]
    %v301 = vld [vmem:[#allocation9 + $0x3b8] sm:$0xff]
    %v302 = vld [vmem:[#allocation9 + $0x3c0] sm:$0xff]
    %v303 = vld [vmem:[#allocation9 + $0x3c8] sm:$0xff]
    %v304 = vld [vmem:[#allocation9 + $0x3d0] sm:$0xff]
    %v305 = vld [vmem:[#allocation9 + $0x3d8] sm:$0xff]
    %v306 = vld [vmem:[#allocation9 + $0x3e0] sm:$0xff]
    %v307 = vld [vmem:[#allocation9 + $0x3e8] sm:$0xff]
    %v308 = vld [vmem:[#allocation9 + $0x3f0] sm:$0xff]
    %v309 = vld [vmem:[#allocation9 + $0x3f8] sm:$0xff]
    %v310 = vld [vmem:[#allocation9 + $0x400] sm:$0xff]
    %v311 = vld [vmem:[#allocation9 + $0x408] sm:$0xff]
    %v312 = vld [vmem:[#allocation9 + $0x410] sm:$0xff]
    %v313 = vld [vmem:[#allocation9 + $0x418] sm:$0xff]
    %v314 = vld [vmem:[#allocation9 + $0x420] sm:$0xff]
    %v315 = vld [vmem:[#allocation9 + $0x428] sm:$0xff]
    %v316 = vld [vmem:[#allocation9 + $0x430] sm:$0xff]
    %v317 = vld [vmem:[#allocation9 + $0x438] sm:$0xff]
    %v318 = vld [vmem:[#allocation9 + $0x440] sm:$0xff]
    %v319 = vld [vmem:[#allocation9 + $0x448] sm:$0xff]
    %v320 = vld [vmem:[#allocation9 + $0x450] sm:$0xff]
    %v321 = vld [vmem:[#allocation9 + $0x458] sm:$0xff]
    %v322 = vld [vmem:[#allocation9 + $0x460] sm:$0xff]
    %v323 = vld [vmem:[#allocation9 + $0x468] sm:$0xff]
    %v324 = vld [vmem:[#allocation9 + $0x470] sm:$0xff]
    %v325 = vld [vmem:[#allocation9 + $0x478] sm:$0xff]
    %v326 = vld [vmem:[#allocation9 + $0x480] sm:$0xff]
    %v327 = vld [vmem:[#allocation9 + $0x488] sm:$0xff]
    %v328 = vld [vmem:[#allocation9 + $0x490] sm:$0xff]
    %v329 = vld [vmem:[#allocation9 + $0x498] sm:$0xff]
    %v330 = vld [vmem:[#allocation9 + $0x4a0] sm:$0xff]
    %v331 = vld [vmem:[#allocation9 + $0x4a8] sm:$0xff]
    %v332 = vld [vmem:[#allocation9 + $0x4b0] sm:$0xff]
    %v333 = vld [vmem:[#allocation9 + $0x4b8] sm:$0xff]
    %v334 = vld [vmem:[#allocation9 + $0x4c0] sm:$0xff]
    %v335 = vld [vmem:[#allocation9 + $0x4c8] sm:$0xff]
    %v336 = vld [vmem:[#allocation9 + $0x4d0] sm:$0xff]
    %v337 = vld [vmem:[#allocation9 + $0x4d8] sm:$0xff]
    %v338 = vld [vmem:[#allocation9 + $0x4e0] sm:$0xff]
    %v339 = vld [vmem:[#allocation9 + $0x4e8] sm:$0xff]
    %v340 = vld [vmem:[#allocation9 + $0x4f0] sm:$0xff]
    %v341 = vld [vmem:[#allocation9 + $0x4f8] sm:$0xff]
    %v342 = vld [vmem:[#allocation9 + $0x500] sm:$0xff]
    %v343 = vld [vmem:[#allocation9 + $0x508] sm:$0xff]
    %v344 = vld [vmem:[#allocation9 + $0x510] sm:$0xff]
    %v345 = vld [vmem:[#allocation9 + $0x518] sm:$0xff]
    %v346 = vld [vmem:[#allocation9 + $0x520] sm:$0xff]
    %v347 = vld [vmem:[#allocation9 + $0x528] sm:$0xff]
    %v348 = vld [vmem:[#allocation9 + $0x530] sm:$0xff]
    %v349 = vld [vmem:[#allocation9 + $0x538] sm:$0xff]
    %v350 = vld [vmem:[#allocation9 + $0x540] sm:$0xff]
    %v351 = vld [vmem:[#allocation9 + $0x548] sm:$0xff]
    %v352 = vld [vmem:[#allocation9 + $0x550] sm:$0xff]
    %v353 = vld [vmem:[#allocation9 + $0x558] sm:$0xff]
    %v354 = vld [vmem:[#allocation9 + $0x560] sm:$0xff]
    %v355 = vld [vmem:[#allocation9 + $0x568] sm:$0xff]
    %v356 = vld [vmem:[#allocation9 + $0x570] sm:$0xff]
    %v357 = vld [vmem:[#allocation9 + $0x578] sm:$0xff]
    %v358 = vld [vmem:[#allocation9 + $0x580] sm:$0xff]
    %v359 = vld [vmem:[#allocation9 + $0x588] sm:$0xff]
    %v360 = vld [vmem:[#allocation9 + $0x590] sm:$0xff]
    %v361 = vld [vmem:[#allocation9 + $0x598] sm:$0xff]
    %v362 = vld [vmem:[#allocation9 + $0x5a0] sm:$0xff]
    %v363 = vld [vmem:[#allocation9 + $0x5a8] sm:$0xff]
    %v364 = vld [vmem:[#allocation9 + $0x5b0] sm:$0xff]
    %v365 = vld [vmem:[#allocation9 + $0x5b8] sm:$0xff]
    %v366 = vld [vmem:[#allocation9 + $0x5c0] sm:$0xff]
    %v367 = vld [vmem:[#allocation9 + $0x5c8] sm:$0xff]
    %v368 = vld [vmem:[#allocation9 + $0x5d0] sm:$0xff]
    %v369 = vld [vmem:[#allocation9 + $0x5d8] sm:$0xff]
    %v370 = vld [vmem:[#allocation9 + $0x5e0] sm:$0xff]
    %v371 = vld [vmem:[#allocation9 + $0x5e8] sm:$0xff]
    %v372 = vld [vmem:[#allocation9 + $0x5f0] sm:$0xff]
    %v373 = vld [vmem:[#allocation9 + $0x5f8] sm:$0xff]
    %v374 = vld [vmem:[#allocation9 + $0x600] sm:$0xff]
    %v375 = vld [vmem:[#allocation9 + $0x608] sm:$0xff]
    %v376 = vld [vmem:[#allocation9 + $0x610] sm:$0xff]
    %v377 = vld [vmem:[#allocation9 + $0x618] sm:$0xff]
    %v378 = vld [vmem:[#allocation9 + $0x620] sm:$0xff]
    %v379 = vld [vmem:[#allocation9 + $0x628] sm:$0xff]
    %v380 = vld [vmem:[#allocation9 + $0x630] sm:$0xff]
    %v381 = vld [vmem:[#allocation9 + $0x638] sm:$0xff]
    %v382 = vld [vmem:[#allocation9 + $0x640] sm:$0xff]
    %v383 = vld [vmem:[#allocation9 + $0x648] sm:$0xff]
    %v384 = vld [vmem:[#allocation9 + $0x650] sm:$0xff]
    %v385 = vld [vmem:[#allocation9 + $0x658] sm:$0xff]
    %v386 = vld [vmem:[#allocation9 + $0x660] sm:$0xff]
    %v387 = vld [vmem:[#allocation9 + $0x668] sm:$0xff]
    %v388 = vld [vmem:[#allocation9 + $0x670] sm:$0xff]
    %v389 = vld [vmem:[#allocation9 + $0x678] sm:$0xff]
    %v390 = vld [vmem:[#allocation9 + $0x680] sm:$0xff]
    %v391 = vld [vmem:[#allocation9 + $0x688] sm:$0xff]
    %v392 = vld [vmem:[#allocation9 + $0x690] sm:$0xff]
    %v393 = vld [vmem:[#allocation9 + $0x698] sm:$0xff]
    %v394 = vld [vmem:[#allocation9 + $0x6a0] sm:$0xff]
    %v395 = vld [vmem:[#allocation9 + $0x6a8] sm:$0xff]
    %v396 = vld [vmem:[#allocation9 + $0x6b0] sm:$0xff]
    %v397 = vld [vmem:[#allocation9 + $0x6b8] sm:$0xff]
    %v398 = vld [vmem:[#allocation9 + $0x6c0] sm:$0xff]
    %v399 = vld [vmem:[#allocation9 + $0x6c8] sm:$0xff]
    %v400 = vld [vmem:[#allocation9 + $0x6d0] sm:$0xff]
    %v401 = vld [vmem:[#allocation9 + $0x6d8] sm:$0xff]
    %v402 = vld [vmem:[#allocation9 + $0x6e0] sm:$0xff]
    %v403 = vld [vmem:[#allocation9 + $0x6e8] sm:$0xff]
    %v404 = vld [vmem:[#allocation9 + $0x6f0] sm:$0xff]
    %v405 = vld [vmem:[#allocation9 + $0x6f8] sm:$0xff]
    %v406 = vld [vmem:[#allocation9 + $0x700] sm:$0xff]
    %v407 = vld [vmem:[#allocation9 + $0x708] sm:$0xff]
    %v408 = vld [vmem:[#allocation9 + $0x710] sm:$0xff]
    %v409 = vld [vmem:[#allocation9 + $0x718] sm:$0xff]
    %v410 = vld [vmem:[#allocation9 + $0x720] sm:$0xff]
    %v411 = vld [vmem:[#allocation9 + $0x728] sm:$0xff]
    %v412 = vld [vmem:[#allocation9 + $0x730] sm:$0xff]
    %v413 = vld [vmem:[#allocation9 + $0x738] sm:$0xff]
    %v414 = vld [vmem:[#allocation9 + $0x740] sm:$0xff]
    %v415 = vld [vmem:[#allocation9 + $0x748] sm:$0xff]
    %v416 = vld [vmem:[#allocation9 + $0x750] sm:$0xff]
    %v417 = vld [vmem:[#allocation9 + $0x758] sm:$0xff]
    %v418 = vld [vmem:[#allocation9 + $0x760] sm:$0xff]
    %v419 = vld [vmem:[#allocation9 + $0x768] sm:$0xff]
    %v420 = vld [vmem:[#allocation9 + $0x770] sm:$0xff]
    %v421 = vld [vmem:[#allocation9 + $0x778] sm:$0xff]
    %v422 = vld [vmem:[#allocation9 + $0x780] sm:$0xff]
    %v423 = vld [vmem:[#allocation9 + $0x788] sm:$0xff]
    %v424 = vld [vmem:[#allocation9 + $0x790] sm:$0xff]
    %v425 = vld [vmem:[#allocation9 + $0x798] sm:$0xff]
    %v426 = vld [vmem:[#allocation9 + $0x7a0] sm:$0xff]
    %v427 = vld [vmem:[#allocation9 + $0x7a8] sm:$0xff]
    %v428 = vld [vmem:[#allocation9 + $0x7b0] sm:$0xff]
    %v429 = vld [vmem:[#allocation9 + $0x7b8] sm:$0xff]
    %v430 = vld [vmem:[#allocation9 + $0x7c0] sm:$0xff]
    %v431 = vld [vmem:[#allocation9 + $0x7c8] sm:$0xff]
    %v432 = vld [vmem:[#allocation9 + $0x7d0] sm:$0xff]
    %v433 = vld [vmem:[#allocation9 + $0x7d8] sm:$0xff]
    %v434 = vld [vmem:[#allocation9 + $0x7e0] sm:$0xff]
    %v435 = vld [vmem:[#allocation9 + $0x7e8] sm:$0xff]
    %v436 = vld [vmem:[#allocation9 + $0x7f0] sm:$0xff]
    %v437 = vld [vmem:[#allocation9 + $0x7f8] sm:$0xff]
    %438 = vmatpush.msra.mxu0 %v302
    %439 = vmatpush.msra.mxu0 %v294
    %440 = vmatpush.msra.mxu0 %v286
    %441 = vmatpush.msra.mxu0 %v278
    %442 = vmatpush.msra.mxu0 %v270
    %443 = vmatpush.msra.mxu0 %v262
    %444 = vmatpush.msra.mxu0 %v254
    %445 = vmatpush.msra.mxu0 %v246
    %446 = vmatpush.msra.mxu0 %v238
    %447 = vmatpush.msra.mxu0 %v230
    %448 = vmatpush.msra.mxu0 %v222
    %449 = vmatpush.msra.mxu0 %v214
    %450 = vmatpush.msra.mxu0 %v206
    %451 = vmatpush.msra.mxu0 %v198
    %452 = vmatpush.msra.mxu0 %v190
    %453 = vmatpush.msra.mxu0 %v182
    %454 = vmatmul.f32.gmra.mxu0 %v180
    %v455 = vpop.f32.mrf.mxu0
    %v456 = vadd.f32 0.0, %v455
    %457 = vdwg.mxu0
    %458 = vmatpush.msra.mxu0 %v430
    %459 = vmatpush.msra.mxu0 %v422
    %460 = vmatpush.msra.mxu0 %v414
    %461 = vmatpush.msra.mxu0 %v406
    %462 = vmatpush.msra.mxu0 %v398
    %463 = vmatpush.msra.mxu0 %v390
    %464 = vmatpush.msra.mxu0 %v382
    %465 = vmatpush.msra.mxu0 %v374
    %466 = vmatpush.msra.mxu0 %v366
    %467 = vmatpush.msra.mxu0 %v358
    %468 = vmatpush.msra.mxu0 %v350
    %469 = vmatpush.msra.mxu0 %v342
    %470 = vmatpush.msra.mxu0 %v334
    %471 = vmatpush.msra.mxu0 %v326
    %472 = vmatpush.msra.mxu0 %v318
    %473 = vmatpush.msra.mxu0 %v310
    %474 = vmatmul.f32.gmra.mxu0 %v181
    %v475 = vpop.f32.mrf.mxu0
    %v476 = vadd.f32 %v456, %v475
    %477 = vdwg.mxu0
    %478 = vmatpush.msra.mxu0 %v303
    %479 = vmatpush.msra.mxu0 %v295
    %480 = vmatpush.msra.mxu0 %v287
    %481 = vmatpush.msra.mxu0 %v279
    %482 = vmatpush.msra.mxu0 %v271
    %483 = vmatpush.msra.mxu0 %v263
    %484 = vmatpush.msra.mxu0 %v255
    %485 = vmatpush.msra.mxu0 %v247
    %486 = vmatpush.msra.mxu0 %v239
    %487 = vmatpush.msra.mxu0 %v231
    %488 = vmatpush.msra.mxu0 %v223
    %489 = vmatpush.msra.mxu0 %v215
    %490 = vmatpush.msra.mxu0 %v207
    %491 = vmatpush.msra.mxu0 %v199
    %492 = vmatpush.msra.mxu0 %v191
    %493 = vmatpush.msra.mxu0 %v183
    %494 = vmatmul.f32.gmra.mxu0 %v180
    %v495 = vpop.f32.mrf.mxu0
    %v496 = vadd.f32 0.0, %v495
    %497 = vdwg.mxu0
    %498 = vmatpush.msra.mxu0 %v431
    %499 = vmatpush.msra.mxu0 %v423
    %500 = vmatpush.msra.mxu0 %v415
    %501 = vmatpush.msra.mxu0 %v407
    %502 = vmatpush.msra.mxu0 %v399
    %503 = vmatpush.msra.mxu0 %v391
    %504 = vmatpush.msra.mxu0 %v383
    %505 = vmatpush.msra.mxu0 %v375
    %506 = vmatpush.msra.mxu0 %v367
    %507 = vmatpush.msra.mxu0 %v359
    %508 = vmatpush.msra.mxu0 %v351
    %509 = vmatpush.msra.mxu0 %v343
    %510 = vmatpush.msra.mxu0 %v335
    %511 = vmatpush.msra.mxu0 %v327
    %512 = vmatpush.msra.mxu0 %v319
    %513 = vmatpush.msra.mxu0 %v311
    %514 = vmatmul.f32.gmra.mxu0 %v181
    %v515 = vpop.f32.mrf.mxu0
    %v516 = vadd.f32 %v496, %v515
    %517 = vdwg.mxu0
    %518 = vmatpush.msra.mxu0 %v304
    %519 = vmatpush.msra.mxu0 %v296
    %520 = vmatpush.msra.mxu0 %v288
    %521 = vmatpush.msra.mxu0 %v280
    %522 = vmatpush.msra.mxu0 %v272
    %523 = vmatpush.msra.mxu0 %v264
    %524 = vmatpush.msra.mxu0 %v256
    %525 = vmatpush.msra.mxu0 %v248
    %526 = vmatpush.msra.mxu0 %v240
    %527 = vmatpush.msra.mxu0 %v232
    %528 = vmatpush.msra.mxu0 %v224
    %529 = vmatpush.msra.mxu0 %v216
    %530 = vmatpush.msra.mxu0 %v208
    %531 = vmatpush.msra.mxu0 %v200
    %532 = vmatpush.msra.mxu0 %v192
    %533 = vmatpush.msra.mxu0 %v184
    %534 = vmatmul.f32.gmra.mxu0 %v180
    %v535 = vpop.f32.mrf.mxu0
    %v536 = vadd.f32 0.0, %v535
    %537 = vdwg.mxu0
    %538 = vmatpush.msra.mxu0 %v432
    %539 = vmatpush.msra.mxu0 %v424
    %540 = vmatpush.msra.mxu0 %v416
    %541 = vmatpush.msra.mxu0 %v408
    %542 = vmatpush.msra.mxu0 %v400
    %543 = vmatpush.msra.mxu0 %v392
    %544 = vmatpush.msra.mxu0 %v384
    %545 = vmatpush.msra.mxu0 %v376
    %546 = vmatpush.msra.mxu0 %v368
    %547 = vmatpush.msra.mxu0 %v360
    %548 = vmatpush.msra.mxu0 %v352
    %549 = vmatpush.msra.mxu0 %v344
    %550 = vmatpush.msra.mxu0 %v336
    %551 = vmatpush.msra.mxu0 %v328
    %552 = vmatpush.msra.mxu0 %v320
    %553 = vmatpush.msra.mxu0 %v312
    %554 = vmatmul.f32.gmra.mxu0 %v181
    %v555 = vpop.f32.mrf.mxu0
    %v556 = vadd.f32 %v536, %v555
    %557 = vdwg.mxu0
    %558 = vmatpush.msra.mxu0 %v305
    %559 = vmatpush.msra.mxu0 %v297
    %560 = vmatpush.msra.mxu0 %v289
    %561 = vmatpush.msra.mxu0 %v281
    %562 = vmatpush.msra.mxu0 %v273
    %563 = vmatpush.msra.mxu0 %v265
    %564 = vmatpush.msra.mxu0 %v257
    %565 = vmatpush.msra.mxu0 %v249
    %566 = vmatpush.msra.mxu0 %v241
    %567 = vmatpush.msra.mxu0 %v233
    %568 = vmatpush.msra.mxu0 %v225
    %569 = vmatpush.msra.mxu0 %v217
    %570 = vmatpush.msra.mxu0 %v209
    %571 = vmatpush.msra.mxu0 %v201
    %572 = vmatpush.msra.mxu0 %v193
    %573 = vmatpush.msra.mxu0 %v185
    %574 = vmatmul.f32.gmra.mxu0 %v180
    %v575 = vpop.f32.mrf.mxu0
    %v576 = vadd.f32 0.0, %v575
    %577 = vdwg.mxu0
    %578 = vmatpush.msra.mxu0 %v433
    %579 = vmatpush.msra.mxu0 %v425
    %580 = vmatpush.msra.mxu0 %v417
    %581 = vmatpush.msra.mxu0 %v409
    %582 = vmatpush.msra.mxu0 %v401
    %583 = vmatpush.msra.mxu0 %v393
    %584 = vmatpush.msra.mxu0 %v385
    %585 = vmatpush.msra.mxu0 %v377
    %586 = vmatpush.msra.mxu0 %v369
    %587 = vmatpush.msra.mxu0 %v361
    %588 = vmatpush.msra.mxu0 %v353
    %589 = vmatpush.msra.mxu0 %v345
    %590 = vmatpush.msra.mxu0 %v337
    %591 = vmatpush.msra.mxu0 %v329
    %592 = vmatpush.msra.mxu0 %v321
    %593 = vmatpush.msra.mxu0 %v313
    %594 = vmatmul.f32.gmra.mxu0 %v181
    %v595 = vpop.f32.mrf.mxu0
    %v596 = vadd.f32 %v576, %v595
    %597 = vdwg.mxu0
    %598 = vmatpush.msra.mxu0 %v306
    %599 = vmatpush.msra.mxu0 %v298
    %600 = vmatpush.msra.mxu0 %v290
    %601 = vmatpush.msra.mxu0 %v282
    %602 = vmatpush.msra.mxu0 %v274
    %603 = vmatpush.msra.mxu0 %v266
    %604 = vmatpush.msra.mxu0 %v258
    %605 = vmatpush.msra.mxu0 %v250
    %606 = vmatpush.msra.mxu0 %v242
    %607 = vmatpush.msra.mxu0 %v234
    %608 = vmatpush.msra.mxu0 %v226
    %609 = vmatpush.msra.mxu0 %v218
    %610 = vmatpush.msra.mxu0 %v210
    %611 = vmatpush.msra.mxu0 %v202
    %612 = vmatpush.msra.mxu0 %v194
    %613 = vmatpush.msra.mxu0 %v186
    %614 = vmatmul.f32.gmra.mxu0 %v180
    %v615 = vpop.f32.mrf.mxu0
    %v616 = vadd.f32 0.0, %v615
    %617 = vdwg.mxu0
    %618 = vmatpush.msra.mxu0 %v434
    %619 = vmatpush.msra.mxu0 %v426
    %620 = vmatpush.msra.mxu0 %v418
    %621 = vmatpush.msra.mxu0 %v410
    %622 = vmatpush.msra.mxu0 %v402
    %623 = vmatpush.msra.mxu0 %v394
    %624 = vmatpush.msra.mxu0 %v386
    %625 = vmatpush.msra.mxu0 %v378
    %626 = vmatpush.msra.mxu0 %v370
    %627 = vmatpush.msra.mxu0 %v362
    %628 = vmatpush.msra.mxu0 %v354
    %629 = vmatpush.msra.mxu0 %v346
    %630 = vmatpush.msra.mxu0 %v338
    %631 = vmatpush.msra.mxu0 %v330
    %632 = vmatpush.msra.mxu0 %v322
    %633 = vmatpush.msra.mxu0 %v314
    %634 = vmatmul.f32.gmra.mxu0 %v181
    %v635 = vpop.f32.mrf.mxu0
    %v636 = vadd.f32 %v616, %v635
    %637 = vdwg.mxu0
    %638 = vmatpush.msra.mxu0 %v307
    %639 = vmatpush.msra.mxu0 %v299
    %640 = vmatpush.msra.mxu0 %v291
    %641 = vmatpush.msra.mxu0 %v283
    %642 = vmatpush.msra.mxu0 %v275
    %643 = vmatpush.msra.mxu0 %v267
    %644 = vmatpush.msra.mxu0 %v259
    %645 = vmatpush.msra.mxu0 %v251
    %646 = vmatpush.msra.mxu0 %v243
    %647 = vmatpush.msra.mxu0 %v235
    %648 = vmatpush.msra.mxu0 %v227
    %649 = vmatpush.msra.mxu0 %v219
    %650 = vmatpush.msra.mxu0 %v211
    %651 = vmatpush.msra.mxu0 %v203
    %652 = vmatpush.msra.mxu0 %v195
    %653 = vmatpush.msra.mxu0 %v187
    %654 = vmatmul.f32.gmra.mxu0 %v180
    %v655 = vpop.f32.mrf.mxu0
    %v656 = vadd.f32 0.0, %v655
    %657 = vdwg.mxu0
    %658 = vmatpush.msra.mxu0 %v435
    %659 = vmatpush.msra.mxu0 %v427
    %660 = vmatpush.msra.mxu0 %v419
    %661 = vmatpush.msra.mxu0 %v411
    %662 = vmatpush.msra.mxu0 %v403
    %663 = vmatpush.msra.mxu0 %v395
    %664 = vmatpush.msra.mxu0 %v387
    %665 = vmatpush.msra.mxu0 %v379
    %666 = vmatpush.msra.mxu0 %v371
    %667 = vmatpush.msra.mxu0 %v363
    %668 = vmatpush.msra.mxu0 %v355
    %669 = vmatpush.msra.mxu0 %v347
    %670 = vmatpush.msra.mxu0 %v339
    %671 = vmatpush.msra.mxu0 %v331
    %672 = vmatpush.msra.mxu0 %v323
    %673 = vmatpush.msra.mxu0 %v315
    %674 = vmatmul.f32.gmra.mxu0 %v181
    %v675 = vpop.f32.mrf.mxu0
    %v676 = vadd.f32 %v656, %v675
    %677 = vdwg.mxu0
    %678 = vmatpush.msra.mxu0 %v308
    %679 = vmatpush.msra.mxu0 %v300
    %680 = vmatpush.msra.mxu0 %v292
    %681 = vmatpush.msra.mxu0 %v284
    %682 = vmatpush.msra.mxu0 %v276
    %683 = vmatpush.msra.mxu0 %v268
    %684 = vmatpush.msra.mxu0 %v260
    %685 = vmatpush.msra.mxu0 %v252
    %686 = vmatpush.msra.mxu0 %v244
    %687 = vmatpush.msra.mxu0 %v236
    %688 = vmatpush.msra.mxu0 %v228
    %689 = vmatpush.msra.mxu0 %v220
    %690 = vmatpush.msra.mxu0 %v212
    %691 = vmatpush.msra.mxu0 %v204
    %692 = vmatpush.msra.mxu0 %v196
    %693 = vmatpush.msra.mxu0 %v188
    %694 = vmatmul.f32.gmra.mxu0 %v180
    %v695 = vpop.f32.mrf.mxu0
    %v696 = vadd.f32 0.0, %v695
    %697 = vdwg.mxu0
    %698 = vmatpush.msra.mxu0 %v436
    %699 = vmatpush.msra.mxu0 %v428
    %700 = vmatpush.msra.mxu0 %v420
    %701 = vmatpush.msra.mxu0 %v412
    %702 = vmatpush.msra.mxu0 %v404
    %703 = vmatpush.msra.mxu0 %v396
    %704 = vmatpush.msra.mxu0 %v388
    %705 = vmatpush.msra.mxu0 %v380
    %706 = vmatpush.msra.mxu0 %v372
    %707 = vmatpush.msra.mxu0 %v364
    %708 = vmatpush.msra.mxu0 %v356
    %709 = vmatpush.msra.mxu0 %v348
    %710 = vmatpush.msra.mxu0 %v340
    %711 = vmatpush.msra.mxu0 %v332
    %712 = vmatpush.msra.mxu0 %v324
    %713 = vmatpush.msra.mxu0 %v316
    %714 = vmatmul.f32.gmra.mxu0 %v181
    %v715 = vpop.f32.mrf.mxu0
    %v716 = vadd.f32 %v696, %v715
    %717 = vdwg.mxu0
    %718 = vmatpush.msra.mxu0 %v309
    %719 = vmatpush.msra.mxu0 %v301
    %720 = vmatpush.msra.mxu0 %v293
    %721 = vmatpush.msra.mxu0 %v285
    %722 = vmatpush.msra.mxu0 %v277
    %723 = vmatpush.msra.mxu0 %v269
    %724 = vmatpush.msra.mxu0 %v261
    %725 = vmatpush.msra.mxu0 %v253
    %726 = vmatpush.msra.mxu0 %v245
    %727 = vmatpush.msra.mxu0 %v237
    %728 = vmatpush.msra.mxu0 %v229
    %729 = vmatpush.msra.mxu0 %v221
    %730 = vmatpush.msra.mxu0 %v213
    %731 = vmatpush.msra.mxu0 %v205
    %732 = vmatpush.msra.mxu0 %v197
    %733 = vmatpush.msra.mxu0 %v189
    %734 = vmatmul.f32.gmra.mxu0 %v180
    %v735 = vpop.f32.mrf.mxu0
    %v736 = vadd.f32 0.0, %v735
    %737 = vdwg.mxu0
    %738 = vmatpush.msra.mxu0 %v437
    %739 = vmatpush.msra.mxu0 %v429
    %740 = vmatpush.msra.mxu0 %v421
    %741 = vmatpush.msra.mxu0 %v413
    %742 = vmatpush.msra.mxu0 %v405
    %743 = vmatpush.msra.mxu0 %v397
    %744 = vmatpush.msra.mxu0 %v389
    %745 = vmatpush.msra.mxu0 %v381
    %746 = vmatpush.msra.mxu0 %v373
    %747 = vmatpush.msra.mxu0 %v365
    %748 = vmatpush.msra.mxu0 %v357
    %749 = vmatpush.msra.mxu0 %v349
    %750 = vmatpush.msra.mxu0 %v341
    %751 = vmatpush.msra.mxu0 %v333
    %752 = vmatpush.msra.mxu0 %v325
    %753 = vmatpush.msra.mxu0 %v317
    %754 = vmatmul.f32.gmra.mxu0 %v181
    %v755 = vpop.f32.mrf.mxu0
    %v756 = vadd.f32 %v736, %v755
    %757 = vdwg.mxu0
    %vm758 = vcmask 1041408
    %v759 = vsel %vm758, %v476, 0.0
    %v760 = vrot.slane %v759, 4
    %v761 = vadd.f32 %v759, %v760
    %v762 = vrot.slane %v761, 2
    %v763 = vadd.f32 %v761, %v762
    %v764 = vrot.slane %v763, 1
    %v765 = vadd.f32 %v763, %v764
    %v766 = vsel %vm758, %v516, 0.0
    %v767 = vrot.slane %v766, 4
    %v768 = vadd.f32 %v766, %v767
    %v769 = vrot.slane %v768, 2
    %v770 = vadd.f32 %v768, %v769
    %v771 = vrot.slane %v770, 1
    %v772 = vadd.f32 %v770, %v771
    %v773 = vsel %vm758, %v556, 0.0
    %v774 = vrot.slane %v773, 4
    %v775 = vadd.f32 %v773, %v774
    %v776 = vrot.slane %v775, 2
    %v777 = vadd.f32 %v775, %v776
    %v778 = vrot.slane %v777, 1
    %v779 = vadd.f32 %v777, %v778
    %v780 = vsel %vm758, %v596, 0.0
    %v781 = vrot.slane %v780, 4
    %v782 = vadd.f32 %v780, %v781
    %v783 = vrot.slane %v782, 2
    %v784 = vadd.f32 %v782, %v783
    %v785 = vrot.slane %v784, 1
    %v786 = vadd.f32 %v784, %v785
    %v787 = vsel %vm758, %v636, 0.0
    %v788 = vrot.slane %v787, 4
    %v789 = vadd.f32 %v787, %v788
    %v790 = vrot.slane %v789, 2
    %v791 = vadd.f32 %v789, %v790
    %v792 = vrot.slane %v791, 1
    %v793 = vadd.f32 %v791, %v792
    %v794 = vsel %vm758, %v676, 0.0
    %v795 = vrot.slane %v794, 4
    %v796 = vadd.f32 %v794, %v795
    %v797 = vrot.slane %v796, 2
    %v798 = vadd.f32 %v796, %v797
    %v799 = vrot.slane %v798, 1
    %v800 = vadd.f32 %v798, %v799
    %v801 = vsel %vm758, %v716, 0.0
    %v802 = vrot.slane %v801, 4
    %v803 = vadd.f32 %v801, %v802
    %v804 = vrot.slane %v803, 2
    %v805 = vadd.f32 %v803, %v804
    %v806 = vrot.slane %v805, 1
    %v807 = vadd.f32 %v805, %v806
    %v808 = vsel %vm758, %v756, 0.0
    %v809 = vrot.slane %v808, 4
    %v810 = vadd.f32 %v808, %v809
    %v811 = vrot.slane %v810, 2
    %v812 = vadd.f32 %v810, %v811
    %v813 = vrot.slane %v812, 1
    %v814 = vadd.f32 %v812, %v813
    %v815 = vmul.f32 %v476, %v476
    %v816 = vmul.f32 %v516, %v516
    %v817 = vmul.f32 %v556, %v556
    %v818 = vmul.f32 %v596, %v596
    %v819 = vmul.f32 %v636, %v636
    %v820 = vmul.f32 %v676, %v676
    %v821 = vmul.f32 %v716, %v716
    %v822 = vmul.f32 %v756, %v756
    %v823 = vsel %vm758, %v815, 0.0
    %v824 = vrot.slane %v823, 4
    %v825 = vadd.f32 %v823, %v824
    %v826 = vrot.slane %v825, 2
    %v827 = vadd.f32 %v825, %v826
    %v828 = vrot.slane %v827, 1
    %v829 = vadd.f32 %v827, %v828
    %v830 = vsel %vm758, %v816, 0.0
    %v831 = vrot.slane %v830, 4
    %v832 = vadd.f32 %v830, %v831
    %v833 = vrot.slane %v832, 2
    %v834 = vadd.f32 %v832, %v833
    %v835 = vrot.slane %v834, 1
    %v836 = vadd.f32 %v834, %v835
    %v837 = vsel %vm758, %v817, 0.0
    %v838 = vrot.slane %v837, 4
    %v839 = vadd.f32 %v837, %v838
    %v840 = vrot.slane %v839, 2
    %v841 = vadd.f32 %v839, %v840
    %v842 = vrot.slane %v841, 1
    %v843 = vadd.f32 %v841, %v842
    %v844 = vsel %vm758, %v818, 0.0
    %v845 = vrot.slane %v844, 4
    %v846 = vadd.f32 %v844, %v845
    %v847 = vrot.slane %v846, 2
    %v848 = vadd.f32 %v846, %v847
    %v849 = vrot.slane %v848, 1
    %v850 = vadd.f32 %v848, %v849
    %v851 = vsel %vm758, %v819, 0.0
    %v852 = vrot.slane %v851, 4
    %v853 = vadd.f32 %v851, %v852
    %v854 = vrot.slane %v853, 2
    %v855 = vadd.f32 %v853, %v854
    %v856 = vrot.slane %v855, 1
    %v857 = vadd.f32 %v855, %v856
    %v858 = vsel %vm758, %v820, 0.0
    %v859 = vrot.slane %v858, 4
    %v860 = vadd.f32 %v858, %v859
    %v861 = vrot.slane %v860, 2
    %v862 = vadd.f32 %v860, %v861
    %v863 = vrot.slane %v862, 1
    %v864 = vadd.f32 %v862, %v863
    %v865 = vsel %vm758, %v821, 0.0
    %v866 = vrot.slane %v865, 4
    %v867 = vadd.f32 %v865, %v866
    %v868 = vrot.slane %v867, 2
    %v869 = vadd.f32 %v867, %v868
    %v870 = vrot.slane %v869, 1
    %v871 = vadd.f32 %v869, %v870
    %v872 = vsel %vm758, %v822, 0.0
    %v873 = vrot.slane %v872, 4
    %v874 = vadd.f32 %v872, %v873
    %v875 = vrot.slane %v874, 2
    %v876 = vadd.f32 %v874, %v875
    %v877 = vrot.slane %v876, 1
    %v878 = vadd.f32 %v876, %v877
    %v879 = vld [vmem:[#allocation11] sm:$0xff]
    %v880 = vld [vmem:[#allocation11 + $0x8] sm:$0xff]
    %v881 = vld [vmem:[#allocation11 + $0x10] sm:$0xff]
    %v882 = vld [vmem:[#allocation11 + $0x18] sm:$0xff]
    %v883 = vld [vmem:[#allocation11 + $0x20] sm:$0xff]
    %v884 = vld [vmem:[#allocation11 + $0x28] sm:$0xff]
    %v885 = vld [vmem:[#allocation11 + $0x30] sm:$0xff]
    %v886 = vld [vmem:[#allocation11 + $0x38] sm:$0xff]
    %v887 = vld [vmem:[#allocation11 + $0x40] sm:$0xff]
    %v888 = vld [vmem:[#allocation11 + $0x48] sm:$0xff]
    %v889 = vld [vmem:[#allocation11 + $0x50] sm:$0xff]
    %v890 = vld [vmem:[#allocation11 + $0x58] sm:$0xff]
    %v891 = vld [vmem:[#allocation11 + $0x60] sm:$0xff]
    %v892 = vld [vmem:[#allocation11 + $0x68] sm:$0xff]
    %v893 = vld [vmem:[#allocation11 + $0x70] sm:$0xff]
    %v894 = vld [vmem:[#allocation11 + $0x78] sm:$0xff]
    %v895 = vld [vmem:[#allocation11 + $0x80] sm:$0xff]
    %v896 = vld [vmem:[#allocation11 + $0x88] sm:$0xff]
    %v897 = vld [vmem:[#allocation11 + $0x90] sm:$0xff]
    %v898 = vld [vmem:[#allocation11 + $0x98] sm:$0xff]
    %v899 = vld [vmem:[#allocation11 + $0xa0] sm:$0xff]
    %v900 = vld [vmem:[#allocation11 + $0xa8] sm:$0xff]
    %v901 = vld [vmem:[#allocation11 + $0xb0] sm:$0xff]
    %v902 = vld [vmem:[#allocation11 + $0xb8] sm:$0xff]
    %v903 = vld [vmem:[#allocation11 + $0xc0] sm:$0xff]
    %v904 = vld [vmem:[#allocation11 + $0xc8] sm:$0xff]
    %v905 = vld [vmem:[#allocation11 + $0xd0] sm:$0xff]
    %v906 = vld [vmem:[#allocation11 + $0xd8] sm:$0xff]
    %v907 = vld [vmem:[#allocation11 + $0xe0] sm:$0xff]
    %v908 = vld [vmem:[#allocation11 + $0xe8] sm:$0xff]
    %v909 = vld [vmem:[#allocation11 + $0xf0] sm:$0xff]
    %v910 = vld [vmem:[#allocation11 + $0xf8] sm:$0xff]
    %v911 = vld [vmem:[#allocation11 + $0x100] sm:$0xff]
    %v912 = vld [vmem:[#allocation11 + $0x108] sm:$0xff]
    %v913 = vld [vmem:[#allocation11 + $0x110] sm:$0xff]
    %v914 = vld [vmem:[#allocation11 + $0x118] sm:$0xff]
    %v915 = vld [vmem:[#allocation11 + $0x120] sm:$0xff]
    %v916 = vld [vmem:[#allocation11 + $0x128] sm:$0xff]
    %v917 = vld [vmem:[#allocation11 + $0x130] sm:$0xff]
    %v918 = vld [vmem:[#allocation11 + $0x138] sm:$0xff]
    %v919 = vld [vmem:[#allocation11 + $0x140] sm:$0xff]
    %v920 = vld [vmem:[#allocation11 + $0x148] sm:$0xff]
    %v921 = vld [vmem:[#allocation11 + $0x150] sm:$0xff]
    %v922 = vld [vmem:[#allocation11 + $0x158] sm:$0xff]
    %v923 = vld [vmem:[#allocation11 + $0x160] sm:$0xff]
    %v924 = vld [vmem:[#allocation11 + $0x168] sm:$0xff]
    %v925 = vld [vmem:[#allocation11 + $0x170] sm:$0xff]
    %v926 = vld [vmem:[#allocation11 + $0x178] sm:$0xff]
    %v927 = vld [vmem:[#allocation11 + $0x180] sm:$0xff]
    %v928 = vld [vmem:[#allocation11 + $0x188] sm:$0xff]
    %v929 = vld [vmem:[#allocation11 + $0x190] sm:$0xff]
    %v930 = vld [vmem:[#allocation11 + $0x198] sm:$0xff]
    %v931 = vld [vmem:[#allocation11 + $0x1a0] sm:$0xff]
    %v932 = vld [vmem:[#allocation11 + $0x1a8] sm:$0xff]
    %v933 = vld [vmem:[#allocation11 + $0x1b0] sm:$0xff]
    %v934 = vld [vmem:[#allocation11 + $0x1b8] sm:$0xff]
    %v935 = vld [vmem:[#allocation11 + $0x1c0] sm:$0xff]
    %v936 = vld [vmem:[#allocation11 + $0x1c8] sm:$0xff]
    %v937 = vld [vmem:[#allocation11 + $0x1d0] sm:$0xff]
    %v938 = vld [vmem:[#allocation11 + $0x1d8] sm:$0xff]
    %v939 = vld [vmem:[#allocation11 + $0x1e0] sm:$0xff]
    %v940 = vld [vmem:[#allocation11 + $0x1e8] sm:$0xff]
    %v941 = vld [vmem:[#allocation11 + $0x1f0] sm:$0xff]
    %v942 = vld [vmem:[#allocation11 + $0x1f8] sm:$0xff]
    %v943 = vld [vmem:[#allocation11 + $0x200] sm:$0xff]
    %v944 = vld [vmem:[#allocation11 + $0x208] sm:$0xff]
    %v945 = vld [vmem:[#allocation11 + $0x210] sm:$0xff]
    %v946 = vld [vmem:[#allocation11 + $0x218] sm:$0xff]
    %v947 = vld [vmem:[#allocation11 + $0x220] sm:$0xff]
    %v948 = vld [vmem:[#allocation11 + $0x228] sm:$0xff]
    %v949 = vld [vmem:[#allocation11 + $0x230] sm:$0xff]
    %v950 = vld [vmem:[#allocation11 + $0x238] sm:$0xff]
    %v951 = vld [vmem:[#allocation11 + $0x240] sm:$0xff]
    %v952 = vld [vmem:[#allocation11 + $0x248] sm:$0xff]
    %v953 = vld [vmem:[#allocation11 + $0x250] sm:$0xff]
    %v954 = vld [vmem:[#allocation11 + $0x258] sm:$0xff]
    %v955 = vld [vmem:[#allocation11 + $0x260] sm:$0xff]
    %v956 = vld [vmem:[#allocation11 + $0x268] sm:$0xff]
    %v957 = vld [vmem:[#allocation11 + $0x270] sm:$0xff]
    %v958 = vld [vmem:[#allocation11 + $0x278] sm:$0xff]
    %v959 = vld [vmem:[#allocation11 + $0x280] sm:$0xff]
    %v960 = vld [vmem:[#allocation11 + $0x288] sm:$0xff]
    %v961 = vld [vmem:[#allocation11 + $0x290] sm:$0xff]
    %v962 = vld [vmem:[#allocation11 + $0x298] sm:$0xff]
    %v963 = vld [vmem:[#allocation11 + $0x2a0] sm:$0xff]
    %v964 = vld [vmem:[#allocation11 + $0x2a8] sm:$0xff]
    %v965 = vld [vmem:[#allocation11 + $0x2b0] sm:$0xff]
    %v966 = vld [vmem:[#allocation11 + $0x2b8] sm:$0xff]
    %v967 = vld [vmem:[#allocation11 + $0x2c0] sm:$0xff]
    %v968 = vld [vmem:[#allocation11 + $0x2c8] sm:$0xff]
    %v969 = vld [vmem:[#allocation11 + $0x2d0] sm:$0xff]
    %v970 = vld [vmem:[#allocation11 + $0x2d8] sm:$0xff]
    %v971 = vld [vmem:[#allocation11 + $0x2e0] sm:$0xff]
    %v972 = vld [vmem:[#allocation11 + $0x2e8] sm:$0xff]
    %v973 = vld [vmem:[#allocation11 + $0x2f0] sm:$0xff]
    %v974 = vld [vmem:[#allocation11 + $0x2f8] sm:$0xff]
    %v975 = vld [vmem:[#allocation11 + $0x300] sm:$0xff]
    %v976 = vld [vmem:[#allocation11 + $0x308] sm:$0xff]
    %v977 = vld [vmem:[#allocation11 + $0x310] sm:$0xff]
    %v978 = vld [vmem:[#allocation11 + $0x318] sm:$0xff]
    %v979 = vld [vmem:[#allocation11 + $0x320] sm:$0xff]
    %v980 = vld [vmem:[#allocation11 + $0x328] sm:$0xff]
    %v981 = vld [vmem:[#allocation11 + $0x330] sm:$0xff]
    %v982 = vld [vmem:[#allocation11 + $0x338] sm:$0xff]
    %v983 = vld [vmem:[#allocation11 + $0x340] sm:$0xff]
    %v984 = vld [vmem:[#allocation11 + $0x348] sm:$0xff]
    %v985 = vld [vmem:[#allocation11 + $0x350] sm:$0xff]
    %v986 = vld [vmem:[#allocation11 + $0x358] sm:$0xff]
    %v987 = vld [vmem:[#allocation11 + $0x360] sm:$0xff]
    %v988 = vld [vmem:[#allocation11 + $0x368] sm:$0xff]
    %v989 = vld [vmem:[#allocation11 + $0x370] sm:$0xff]
    %v990 = vld [vmem:[#allocation11 + $0x378] sm:$0xff]
    %v991 = vld [vmem:[#allocation11 + $0x380] sm:$0xff]
    %v992 = vld [vmem:[#allocation11 + $0x388] sm:$0xff]
    %v993 = vld [vmem:[#allocation11 + $0x390] sm:$0xff]
    %v994 = vld [vmem:[#allocation11 + $0x398] sm:$0xff]
    %v995 = vld [vmem:[#allocation11 + $0x3a0] sm:$0xff]
    %v996 = vld [vmem:[#allocation11 + $0x3a8] sm:$0xff]
    %v997 = vld [vmem:[#allocation11 + $0x3b0] sm:$0xff]
    %v998 = vld [vmem:[#allocation11 + $0x3b8] sm:$0xff]
    %v999 = vld [vmem:[#allocation11 + $0x3c0] sm:$0xff]
    %v1000 = vld [vmem:[#allocation11 + $0x3c8] sm:$0xff]
    %v1001 = vld [vmem:[#allocation11 + $0x3d0] sm:$0xff]
    %v1002 = vld [vmem:[#allocation11 + $0x3d8] sm:$0xff]
    %v1003 = vld [vmem:[#allocation11 + $0x3e0] sm:$0xff]
    %v1004 = vld [vmem:[#allocation11 + $0x3e8] sm:$0xff]
    %v1005 = vld [vmem:[#allocation11 + $0x3f0] sm:$0xff]
    %v1006 = vld [vmem:[#allocation11 + $0x3f8] sm:$0xff]
    %1007 = vmatpush.msra.mxu0 %v894
    %1008 = vmatpush.msra.mxu0 %v893
    %1009 = vmatpush.msra.mxu0 %v892
    %1010 = vmatpush.msra.mxu0 %v891
    %1011 = vmatpush.msra.mxu0 %v890
    %1012 = vmatpush.msra.mxu0 %v889
    %1013 = vmatpush.msra.mxu0 %v888
    %1014 = vmatpush.msra.mxu0 %v887
    %1015 = vmatpush.msra.mxu0 %v886
    %1016 = vmatpush.msra.mxu0 %v885
    %1017 = vmatpush.msra.mxu0 %v884
    %1018 = vmatpush.msra.mxu0 %v883
    %1019 = vmatpush.msra.mxu0 %v882
    %1020 = vmatpush.msra.mxu0 %v881
    %1021 = vmatpush.msra.mxu0 %v880
    %1022 = vmatpush.msra.mxu0 %v879
    %1023 = vmatmul.f32.gmra.mxu0 %v765
    %v1024 = vpop.f32.mrf.mxu0
    %v1025 = vadd.f32 0.0, %v1024
    %1026 = vdwg.mxu0
    %1027 = vmatpush.msra.mxu0 %v910
    %1028 = vmatpush.msra.mxu0 %v909
    %1029 = vmatpush.msra.mxu0 %v908
    %1030 = vmatpush.msra.mxu0 %v907
    %1031 = vmatpush.msra.mxu0 %v906
    %1032 = vmatpush.msra.mxu0 %v905
    %1033 = vmatpush.msra.mxu0 %v904
    %1034 = vmatpush.msra.mxu0 %v903
    %1035 = vmatpush.msra.mxu0 %v902
    %1036 = vmatpush.msra.mxu0 %v901
    %1037 = vmatpush.msra.mxu0 %v900
    %1038 = vmatpush.msra.mxu0 %v899
    %1039 = vmatpush.msra.mxu0 %v898
    %1040 = vmatpush.msra.mxu0 %v897
    %1041 = vmatpush.msra.mxu0 %v896
    %1042 = vmatpush.msra.mxu0 %v895
    %1043 = vmatmul.f32.gmra.mxu0 %v772
    %v1044 = vpop.f32.mrf.mxu0
    %v1045 = vadd.f32 %v1025, %v1044
    %1046 = vdwg.mxu0
    %1047 = vmatpush.msra.mxu0 %v926
    %1048 = vmatpush.msra.mxu0 %v925
    %1049 = vmatpush.msra.mxu0 %v924
    %1050 = vmatpush.msra.mxu0 %v923
    %1051 = vmatpush.msra.mxu0 %v922
    %1052 = vmatpush.msra.mxu0 %v921
    %1053 = vmatpush.msra.mxu0 %v920
    %1054 = vmatpush.msra.mxu0 %v919
    %1055 = vmatpush.msra.mxu0 %v918
    %1056 = vmatpush.msra.mxu0 %v917
    %1057 = vmatpush.msra.mxu0 %v916
    %1058 = vmatpush.msra.mxu0 %v915
    %1059 = vmatpush.msra.mxu0 %v914
    %1060 = vmatpush.msra.mxu0 %v913
    %1061 = vmatpush.msra.mxu0 %v912
    %1062 = vmatpush.msra.mxu0 %v911
    %1063 = vmatmul.f32.gmra.mxu0 %v779
    %v1064 = vpop.f32.mrf.mxu0
    %v1065 = vadd.f32 %v1045, %v1064
    %1066 = vdwg.mxu0
    %1067 = vmatpush.msra.mxu0 %v942
    %1068 = vmatpush.msra.mxu0 %v941
    %1069 = vmatpush.msra.mxu0 %v940
    %1070 = vmatpush.msra.mxu0 %v939
    %1071 = vmatpush.msra.mxu0 %v938
    %1072 = vmatpush.msra.mxu0 %v937
    %1073 = vmatpush.msra.mxu0 %v936
    %1074 = vmatpush.msra.mxu0 %v935
    %1075 = vmatpush.msra.mxu0 %v934
    %1076 = vmatpush.msra.mxu0 %v933
    %1077 = vmatpush.msra.mxu0 %v932
    %1078 = vmatpush.msra.mxu0 %v931
    %1079 = vmatpush.msra.mxu0 %v930
    %1080 = vmatpush.msra.mxu0 %v929
    %1081 = vmatpush.msra.mxu0 %v928
    %1082 = vmatpush.msra.mxu0 %v927
    %1083 = vmatmul.f32.gmra.mxu0 %v786
    %v1084 = vpop.f32.mrf.mxu0
    %v1085 = vadd.f32 %v1065, %v1084
    %1086 = vdwg.mxu0
    %1087 = vmatpush.msra.mxu0 %v958
    %1088 = vmatpush.msra.mxu0 %v957
    %1089 = vmatpush.msra.mxu0 %v956
    %1090 = vmatpush.msra.mxu0 %v955
    %1091 = vmatpush.msra.mxu0 %v954
    %1092 = vmatpush.msra.mxu0 %v953
    %1093 = vmatpush.msra.mxu0 %v952
    %1094 = vmatpush.msra.mxu0 %v951
    %1095 = vmatpush.msra.mxu0 %v950
    %1096 = vmatpush.msra.mxu0 %v949
    %1097 = vmatpush.msra.mxu0 %v948
    %1098 = vmatpush.msra.mxu0 %v947
    %1099 = vmatpush.msra.mxu0 %v946
    %1100 = vmatpush.msra.mxu0 %v945
    %1101 = vmatpush.msra.mxu0 %v944
    %1102 = vmatpush.msra.mxu0 %v943
    %1103 = vmatmul.f32.gmra.mxu0 %v793
    %v1104 = vpop.f32.mrf.mxu0
    %v1105 = vadd.f32 %v1085, %v1104
    %1106 = vdwg.mxu0
    %1107 = vmatpush.msra.mxu0 %v974
    %1108 = vmatpush.msra.mxu0 %v973
    %1109 = vmatpush.msra.mxu0 %v972
    %1110 = vmatpush.msra.mxu0 %v971
    %1111 = vmatpush.msra.mxu0 %v970
    %1112 = vmatpush.msra.mxu0 %v969
    %1113 = vmatpush.msra.mxu0 %v968
    %1114 = vmatpush.msra.mxu0 %v967
    %1115 = vmatpush.msra.mxu0 %v966
    %1116 = vmatpush.msra.mxu0 %v965
    %1117 = vmatpush.msra.mxu0 %v964
    %1118 = vmatpush.msra.mxu0 %v963
    %1119 = vmatpush.msra.mxu0 %v962
    %1120 = vmatpush.msra.mxu0 %v961
    %1121 = vmatpush.msra.mxu0 %v960
    %1122 = vmatpush.msra.mxu0 %v959
    %1123 = vmatmul.f32.gmra.mxu0 %v800
    %v1124 = vpop.f32.mrf.mxu0
    %v1125 = vadd.f32 %v1105, %v1124
    %1126 = vdwg.mxu0
    %1127 = vmatpush.msra.mxu0 %v990
    %1128 = vmatpush.msra.mxu0 %v989
    %1129 = vmatpush.msra.mxu0 %v988
    %1130 = vmatpush.msra.mxu0 %v987
    %1131 = vmatpush.msra.mxu0 %v986
    %1132 = vmatpush.msra.mxu0 %v985
    %1133 = vmatpush.msra.mxu0 %v984
    %1134 = vmatpush.msra.mxu0 %v983
    %1135 = vmatpush.msra.mxu0 %v982
    %1136 = vmatpush.msra.mxu0 %v981
    %1137 = vmatpush.msra.mxu0 %v980
    %1138 = vmatpush.msra.mxu0 %v979
    %1139 = vmatpush.msra.mxu0 %v978
    %1140 = vmatpush.msra.mxu0 %v977
    %1141 = vmatpush.msra.mxu0 %v976
    %1142 = vmatpush.msra.mxu0 %v975
    %1143 = vmatmul.f32.gmra.mxu0 %v807
    %v1144 = vpop.f32.mrf.mxu0
    %v1145 = vadd.f32 %v1125, %v1144
    %1146 = vdwg.mxu0
    %1147 = vmatpush.msra.mxu0 %v1006
    %1148 = vmatpush.msra.mxu0 %v1005
    %1149 = vmatpush.msra.mxu0 %v1004
    %1150 = vmatpush.msra.mxu0 %v1003
    %1151 = vmatpush.msra.mxu0 %v1002
    %1152 = vmatpush.msra.mxu0 %v1001
    %1153 = vmatpush.msra.mxu0 %v1000
    %1154 = vmatpush.msra.mxu0 %v999
    %1155 = vmatpush.msra.mxu0 %v998
    %1156 = vmatpush.msra.mxu0 %v997
    %1157 = vmatpush.msra.mxu0 %v996
    %1158 = vmatpush.msra.mxu0 %v995
    %1159 = vmatpush.msra.mxu0 %v994
    %1160 = vmatpush.msra.mxu0 %v993
    %1161 = vmatpush.msra.mxu0 %v992
    %1162 = vmatpush.msra.mxu0 %v991
    %1163 = vmatmul.f32.gmra.mxu0 %v814
    %v1164 = vpop.f32.mrf.mxu0
    %v1165 = vadd.f32 %v1145, %v1164
    %1166 = vdwg.mxu0
    %v1167 = vmul.f32 %v1165, 0.001953125
    %1168 = vmatpush.msra.mxu0 %v894
    %1169 = vmatpush.msra.mxu0 %v893
    %1170 = vmatpush.msra.mxu0 %v892
    %1171 = vmatpush.msra.mxu0 %v891
    %1172 = vmatpush.msra.mxu0 %v890
    %1173 = vmatpush.msra.mxu0 %v889
    %1174 = vmatpush.msra.mxu0 %v888
    %1175 = vmatpush.msra.mxu0 %v887
    %1176 = vmatpush.msra.mxu0 %v886
    %1177 = vmatpush.msra.mxu0 %v885
    %1178 = vmatpush.msra.mxu0 %v884
    %1179 = vmatpush.msra.mxu0 %v883
    %1180 = vmatpush.msra.mxu0 %v882
    %1181 = vmatpush.msra.mxu0 %v881
    %1182 = vmatpush.msra.mxu0 %v880
    %1183 = vmatpush.msra.mxu0 %v879
    %1184 = vmatmul.f32.gmra.mxu0 %v829
    %v1185 = vpop.f32.mrf.mxu0
    %v1186 = vadd.f32 0.0, %v1185
    %1187 = vdwg.mxu0
    %1188 = vmatpush.msra.mxu0 %v910
    %1189 = vmatpush.msra.mxu0 %v909
    %1190 = vmatpush.msra.mxu0 %v908
    %1191 = vmatpush.msra.mxu0 %v907
    %1192 = vmatpush.msra.mxu0 %v906
    %1193 = vmatpush.msra.mxu0 %v905
    %1194 = vmatpush.msra.mxu0 %v904
    %1195 = vmatpush.msra.mxu0 %v903
    %1196 = vmatpush.msra.mxu0 %v902
    %1197 = vmatpush.msra.mxu0 %v901
    %1198 = vmatpush.msra.mxu0 %v900
    %1199 = vmatpush.msra.mxu0 %v899
    %1200 = vmatpush.msra.mxu0 %v898
    %1201 = vmatpush.msra.mxu0 %v897
    %1202 = vmatpush.msra.mxu0 %v896
    %1203 = vmatpush.msra.mxu0 %v895
    %1204 = vmatmul.f32.gmra.mxu0 %v836
    %v1205 = vpop.f32.mrf.mxu0
    %v1206 = vadd.f32 %v1186, %v1205
    %1207 = vdwg.mxu0
    %1208 = vmatpush.msra.mxu0 %v926
    %1209 = vmatpush.msra.mxu0 %v925
    %1210 = vmatpush.msra.mxu0 %v924
    %1211 = vmatpush.msra.mxu0 %v923
    %1212 = vmatpush.msra.mxu0 %v922
    %1213 = vmatpush.msra.mxu0 %v921
    %1214 = vmatpush.msra.mxu0 %v920
    %1215 = vmatpush.msra.mxu0 %v919
    %1216 = vmatpush.msra.mxu0 %v918
    %1217 = vmatpush.msra.mxu0 %v917
    %1218 = vmatpush.msra.mxu0 %v916
    %1219 = vmatpush.msra.mxu0 %v915
    %1220 = vmatpush.msra.mxu0 %v914
    %1221 = vmatpush.msra.mxu0 %v913
    %1222 = vmatpush.msra.mxu0 %v912
    %1223 = vmatpush.msra.mxu0 %v911
    %1224 = vmatmul.f32.gmra.mxu0 %v843
    %v1225 = vpop.f32.mrf.mxu0
    %v1226 = vadd.f32 %v1206, %v1225
    %1227 = vdwg.mxu0
    %1228 = vmatpush.msra.mxu0 %v942
    %1229 = vmatpush.msra.mxu0 %v941
    %1230 = vmatpush.msra.mxu0 %v940
    %1231 = vmatpush.msra.mxu0 %v939
    %1232 = vmatpush.msra.mxu0 %v938
    %1233 = vmatpush.msra.mxu0 %v937
    %1234 = vmatpush.msra.mxu0 %v936
    %1235 = vmatpush.msra.mxu0 %v935
    %1236 = vmatpush.msra.mxu0 %v934
    %1237 = vmatpush.msra.mxu0 %v933
    %1238 = vmatpush.msra.mxu0 %v932
    %1239 = vmatpush.msra.mxu0 %v931
    %1240 = vmatpush.msra.mxu0 %v930
    %1241 = vmatpush.msra.mxu0 %v929
    %1242 = vmatpush.msra.mxu0 %v928
    %1243 = vmatpush.msra.mxu0 %v927
    %1244 = vmatmul.f32.gmra.mxu0 %v850
    %v1245 = vpop.f32.mrf.mxu0
    %v1246 = vadd.f32 %v1226, %v1245
    %1247 = vdwg.mxu0
    %1248 = vmatpush.msra.mxu0 %v958
    %1249 = vmatpush.msra.mxu0 %v957
    %1250 = vmatpush.msra.mxu0 %v956
    %1251 = vmatpush.msra.mxu0 %v955
    %1252 = vmatpush.msra.mxu0 %v954
    %1253 = vmatpush.msra.mxu0 %v953
    %1254 = vmatpush.msra.mxu0 %v952
    %1255 = vmatpush.msra.mxu0 %v951
    %1256 = vmatpush.msra.mxu0 %v950
    %1257 = vmatpush.msra.mxu0 %v949
    %1258 = vmatpush.msra.mxu0 %v948
    %1259 = vmatpush.msra.mxu0 %v947
    %1260 = vmatpush.msra.mxu0 %v946
    %1261 = vmatpush.msra.mxu0 %v945
    %1262 = vmatpush.msra.mxu0 %v944
    %1263 = vmatpush.msra.mxu0 %v943
    %1264 = vmatmul.f32.gmra.mxu0 %v857
    %v1265 = vpop.f32.mrf.mxu0
    %v1266 = vadd.f32 %v1246, %v1265
    %1267 = vdwg.mxu0
    %1268 = vmatpush.msra.mxu0 %v974
    %1269 = vmatpush.msra.mxu0 %v973
    %1270 = vmatpush.msra.mxu0 %v972
    %1271 = vmatpush.msra.mxu0 %v971
    %1272 = vmatpush.msra.mxu0 %v970
    %1273 = vmatpush.msra.mxu0 %v969
    %1274 = vmatpush.msra.mxu0 %v968
    %1275 = vmatpush.msra.mxu0 %v967
    %1276 = vmatpush.msra.mxu0 %v966
    %1277 = vmatpush.msra.mxu0 %v965
    %1278 = vmatpush.msra.mxu0 %v964
    %1279 = vmatpush.msra.mxu0 %v963
    %1280 = vmatpush.msra.mxu0 %v962
    %1281 = vmatpush.msra.mxu0 %v961
    %1282 = vmatpush.msra.mxu0 %v960
    %1283 = vmatpush.msra.mxu0 %v959
    %1284 = vmatmul.f32.gmra.mxu0 %v864
    %v1285 = vpop.f32.mrf.mxu0
    %v1286 = vadd.f32 %v1266, %v1285
    %1287 = vdwg.mxu0
    %1288 = vmatpush.msra.mxu0 %v990
    %1289 = vmatpush.msra.mxu0 %v989
    %1290 = vmatpush.msra.mxu0 %v988
    %1291 = vmatpush.msra.mxu0 %v987
    %1292 = vmatpush.msra.mxu0 %v986
    %1293 = vmatpush.msra.mxu0 %v985
    %1294 = vmatpush.msra.mxu0 %v984
    %1295 = vmatpush.msra.mxu0 %v983
    %1296 = vmatpush.msra.mxu0 %v982
    %1297 = vmatpush.msra.mxu0 %v981
    %1298 = vmatpush.msra.mxu0 %v980
    %1299 = vmatpush.msra.mxu0 %v979
    %1300 = vmatpush.msra.mxu0 %v978
    %1301 = vmatpush.msra.mxu0 %v977
    %1302 = vmatpush.msra.mxu0 %v976
    %1303 = vmatpush.msra.mxu0 %v975
    %1304 = vmatmul.f32.gmra.mxu0 %v871
    %v1305 = vpop.f32.mrf.mxu0
    %v1306 = vadd.f32 %v1286, %v1305
    %1307 = vdwg.mxu0
    %1308 = vmatpush.msra.mxu0 %v1006
    %1309 = vmatpush.msra.mxu0 %v1005
    %1310 = vmatpush.msra.mxu0 %v1004
    %1311 = vmatpush.msra.mxu0 %v1003
    %1312 = vmatpush.msra.mxu0 %v1002
    %1313 = vmatpush.msra.mxu0 %v1001
    %1314 = vmatpush.msra.mxu0 %v1000
    %1315 = vmatpush.msra.mxu0 %v999
    %1316 = vmatpush.msra.mxu0 %v998
    %1317 = vmatpush.msra.mxu0 %v997
    %1318 = vmatpush.msra.mxu0 %v996
    %1319 = vmatpush.msra.mxu0 %v995
    %1320 = vmatpush.msra.mxu0 %v994
    %1321 = vmatpush.msra.mxu0 %v993
    %1322 = vmatpush.msra.mxu0 %v992
    %1323 = vmatpush.msra.mxu0 %v991
    %1324 = vmatmul.f32.gmra.mxu0 %v878
    %v1325 = vpop.f32.mrf.mxu0
    %v1326 = vadd.f32 %v1306, %v1325
    %1327 = vdwg.mxu0
    %v1328 = vmul.f32 %v1326, 0.001953125
    %v1329 = vmul.f32 %v1167, %v1167
    %v1330 = vsub.f32 %v1328, %v1329
    %v1331 = vadd.f32 %v1330, 1e-05
    %v1332 = vrsqrt.pop %v1331
    %v1333 = vmul.f32 %v1332, %v1331
    %v1334 = vmul.f32 %v1333, %v1332
    %v1335 = vmul.f32 0.5, %v1334
    %v1336 = vsub.f32 1.5, %v1335
    %v1337 = vmul.f32 %v1332, %v1336
    %vm1338 = vweird.f32 %v1331
    %vm1339 = vweird.f32 %v1332
    %vm1340 = vmor %vm1338, %vm1339
    %v1341 = vsel %vm1340, %v1332, %v1337
    %v1342 = vld [vmem:[#allocation12] sm:$0xff]
    %v1343 = vld [vmem:[#allocation12 + $0x8] sm:$0xff]
    %v1344 = vld [vmem:[#allocation12 + $0x10] sm:$0xff]
    %v1345 = vld [vmem:[#allocation12 + $0x18] sm:$0xff]
    %1350 = vst [vmem:[#allocation1] ss:$2 sm:$0xff] %v1342
    %s1351 = scalar_lea.vmem [#allocation1], 16
    %1352 = vst [vmem:[%s1351] ss:$2 sm:$0xff] %v1343
    %s1353 = scalar_lea.vmem [#allocation1], 32
    %1354 = vst [vmem:[%s1353] ss:$2 sm:$0xff] %v1344
    %s1355 = scalar_lea.vmem [#allocation1], 48
    %1356 = vst [vmem:[%s1355] ss:$2 sm:$0xff] %v1345
    %v1357 = vld.sshfl [vmem:[#allocation1] sm:$0xff pattern:$0x75316420]
    %v1358 = vld.sshfl [vmem:[#allocation1 + $0x8] sm:$0xff pattern:$0x75316420]
    %v1359 = vld.sshfl [vmem:[#allocation1 + $0x10] sm:$0xff pattern:$0x75316420]
    %v1360 = vld.sshfl [vmem:[#allocation1 + $0x18] sm:$0xff pattern:$0x75316420]
    %v1361 = vld.sshfl [vmem:[#allocation1 + $0x20] sm:$0xff pattern:$0x75316420]
    %v1362 = vld.sshfl [vmem:[#allocation1 + $0x28] sm:$0xff pattern:$0x75316420]
    %v1363 = vld.sshfl [vmem:[#allocation1 + $0x30] sm:$0xff pattern:$0x75316420]
    %v1364 = vld.sshfl [vmem:[#allocation1 + $0x38] sm:$0xff pattern:$0x75316420]
    %vm1365 = vcmask 31744
    %v1367 = vsel %vm1365, %v1167, 0
    %vm1369 = vcmask 1043456
    %v1370 = vsel %vm1369, %v1357, 0
    %v1372 = vsel %vm1369, %v1358, 0
    %v1374 = vsel %vm1369, %v1359, 0
    %v1376 = vsel %vm1369, %v1360, 0
    %v1378 = vsel %vm1369, %v1361, 0
    %v1380 = vsel %vm1369, %v1362, 0
    %v1382 = vsel %vm1369, %v1363, 0
    %v1384 = vsel %vm1369, %v1364, 0
    %1386 = vmatpush.msra.mxu0 0.0
    %1387 = vmatpush.msra.mxu0 0.0
    %1388 = vmatpush.msra.mxu0 0.0
    %1389 = vmatpush.msra.mxu0 0.0
    %1390 = vmatpush.msra.mxu0 0.0
    %1391 = vmatpush.msra.mxu0 0.0
    %1392 = vmatpush.msra.mxu0 0.0
    %1393 = vmatpush.msra.mxu0 0.0
    %1394 = vmatpush.msra.mxu0 0.0
    %1395 = vmatpush.msra.mxu0 0.0
    %1396 = vmatpush.msra.mxu0 0.0
    %1397 = vmatpush.msra.mxu0 0.0
    %1398 = vmatpush.msra.mxu0 0.0
    %1399 = vmatpush.msra.mxu0 0.0
    %1400 = vmatpush.msra.mxu0 0.0
    %1401 = vmatpush.msra.mxu0 %v1370
    %1402 = vmatmul.f32.gmra.mxu0 %v1367
    %v1403 = vpop.f32.mrf.mxu0
    %v1404 = vadd.f32 0.0, %v1403
    %1405 = vdwg.mxu0
    %1406 = vmatpush.msra.mxu0 0.0
    %1407 = vmatpush.msra.mxu0 0.0
    %1408 = vmatpush.msra.mxu0 0.0
    %1409 = vmatpush.msra.mxu0 0.0
    %1410 = vmatpush.msra.mxu0 0.0
    %1411 = vmatpush.msra.mxu0 0.0
    %1412 = vmatpush.msra.mxu0 0.0
    %1413 = vmatpush.msra.mxu0 0.0
    %1414 = vmatpush.msra.mxu0 0.0
    %1415 = vmatpush.msra.mxu0 0.0
    %1416 = vmatpush.msra.mxu0 0.0
    %1417 = vmatpush.msra.mxu0 0.0
    %1418 = vmatpush.msra.mxu0 0.0
    %1419 = vmatpush.msra.mxu0 0.0
    %1420 = vmatpush.msra.mxu0 0.0
    %1421 = vmatpush.msra.mxu0 %v1372
    %1422 = vmatmul.f32.gmra.mxu0 %v1367
    %v1423 = vpop.f32.mrf.mxu0
    %v1424 = vadd.f32 0.0, %v1423
    %1425 = vdwg.mxu0
    %1426 = vmatpush.msra.mxu0 0.0
    %1427 = vmatpush.msra.mxu0 0.0
    %1428 = vmatpush.msra.mxu0 0.0
    %1429 = vmatpush.msra.mxu0 0.0
    %1430 = vmatpush.msra.mxu0 0.0
    %1431 = vmatpush.msra.mxu0 0.0
    %1432 = vmatpush.msra.mxu0 0.0
    %1433 = vmatpush.msra.mxu0 0.0
    %1434 = vmatpush.msra.mxu0 0.0
    %1435 = vmatpush.msra.mxu0 0.0
    %1436 = vmatpush.msra.mxu0 0.0
    %1437 = vmatpush.msra.mxu0 0.0
    %1438 = vmatpush.msra.mxu0 0.0
    %1439 = vmatpush.msra.mxu0 0.0
    %1440 = vmatpush.msra.mxu0 0.0
    %1441 = vmatpush.msra.mxu0 %v1374
    %1442 = vmatmul.f32.gmra.mxu0 %v1367
    %v1443 = vpop.f32.mrf.mxu0
    %v1444 = vadd.f32 0.0, %v1443
    %1445 = vdwg.mxu0
    %1446 = vmatpush.msra.mxu0 0.0
    %1447 = vmatpush.msra.mxu0 0.0
    %1448 = vmatpush.msra.mxu0 0.0
    %1449 = vmatpush.msra.mxu0 0.0
    %1450 = vmatpush.msra.mxu0 0.0
    %1451 = vmatpush.msra.mxu0 0.0
    %1452 = vmatpush.msra.mxu0 0.0
    %1453 = vmatpush.msra.mxu0 0.0
    %1454 = vmatpush.msra.mxu0 0.0
    %1455 = vmatpush.msra.mxu0 0.0
    %1456 = vmatpush.msra.mxu0 0.0
    %1457 = vmatpush.msra.mxu0 0.0
    %1458 = vmatpush.msra.mxu0 0.0
    %1459 = vmatpush.msra.mxu0 0.0
    %1460 = vmatpush.msra.mxu0 0.0
    %1461 = vmatpush.msra.mxu0 %v1376
    %1462 = vmatmul.f32.gmra.mxu0 %v1367
    %v1463 = vpop.f32.mrf.mxu0
    %v1464 = vadd.f32 0.0, %v1463
    %1465 = vdwg.mxu0
    %1466 = vmatpush.msra.mxu0 0.0
    %1467 = vmatpush.msra.mxu0 0.0
    %1468 = vmatpush.msra.mxu0 0.0
    %1469 = vmatpush.msra.mxu0 0.0
    %1470 = vmatpush.msra.mxu0 0.0
    %1471 = vmatpush.msra.mxu0 0.0
    %1472 = vmatpush.msra.mxu0 0.0
    %1473 = vmatpush.msra.mxu0 0.0
    %1474 = vmatpush.msra.mxu0 0.0
    %1475 = vmatpush.msra.mxu0 0.0
    %1476 = vmatpush.msra.mxu0 0.0
    %1477 = vmatpush.msra.mxu0 0.0
    %1478 = vmatpush.msra.mxu0 0.0
    %1479 = vmatpush.msra.mxu0 0.0
    %1480 = vmatpush.msra.mxu0 0.0
    %1481 = vmatpush.msra.mxu0 %v1378
    %1482 = vmatmul.f32.gmra.mxu0 %v1367
    %v1483 = vpop.f32.mrf.mxu0
    %v1484 = vadd.f32 0.0, %v1483
    %1485 = vdwg.mxu0
    %1486 = vmatpush.msra.mxu0 0.0
    %1487 = vmatpush.msra.mxu0 0.0
    %1488 = vmatpush.msra.mxu0 0.0
    %1489 = vmatpush.msra.mxu0 0.0
    %1490 = vmatpush.msra.mxu0 0.0
    %1491 = vmatpush.msra.mxu0 0.0
    %1492 = vmatpush.msra.mxu0 0.0
    %1493 = vmatpush.msra.mxu0 0.0
    %1494 = vmatpush.msra.mxu0 0.0
    %1495 = vmatpush.msra.mxu0 0.0
    %1496 = vmatpush.msra.mxu0 0.0
    %1497 = vmatpush.msra.mxu0 0.0
    %1498 = vmatpush.msra.mxu0 0.0
    %1499 = vmatpush.msra.mxu0 0.0
    %1500 = vmatpush.msra.mxu0 0.0
    %1501 = vmatpush.msra.mxu0 %v1380
    %1502 = vmatmul.f32.gmra.mxu0 %v1367
    %v1503 = vpop.f32.mrf.mxu0
    %v1504 = vadd.f32 0.0, %v1503
    %1505 = vdwg.mxu0
    %1506 = vmatpush.msra.mxu0 0.0
    %1507 = vmatpush.msra.mxu0 0.0
    %1508 = vmatpush.msra.mxu0 0.0
    %1509 = vmatpush.msra.mxu0 0.0
    %1510 = vmatpush.msra.mxu0 0.0
    %1511 = vmatpush.msra.mxu0 0.0
    %1512 = vmatpush.msra.mxu0 0.0
    %1513 = vmatpush.msra.mxu0 0.0
    %1514 = vmatpush.msra.mxu0 0.0
    %1515 = vmatpush.msra.mxu0 0.0
    %1516 = vmatpush.msra.mxu0 0.0
    %1517 = vmatpush.msra.mxu0 0.0
    %1518 = vmatpush.msra.mxu0 0.0
    %1519 = vmatpush.msra.mxu0 0.0
    %1520 = vmatpush.msra.mxu0 0.0
    %1521 = vmatpush.msra.mxu0 %v1382
    %1522 = vmatmul.f32.gmra.mxu0 %v1367
    %v1523 = vpop.f32.mrf.mxu0
    %v1524 = vadd.f32 0.0, %v1523
    %1525 = vdwg.mxu0
    %1526 = vmatpush.msra.mxu0 0.0
    %1527 = vmatpush.msra.mxu0 0.0
    %1528 = vmatpush.msra.mxu0 0.0
    %1529 = vmatpush.msra.mxu0 0.0
    %1530 = vmatpush.msra.mxu0 0.0
    %1531 = vmatpush.msra.mxu0 0.0
    %1532 = vmatpush.msra.mxu0 0.0
    %1533 = vmatpush.msra.mxu0 0.0
    %1534 = vmatpush.msra.mxu0 0.0
    %1535 = vmatpush.msra.mxu0 0.0
    %1536 = vmatpush.msra.mxu0 0.0
    %1537 = vmatpush.msra.mxu0 0.0
    %1538 = vmatpush.msra.mxu0 0.0
    %1539 = vmatpush.msra.mxu0 0.0
    %1540 = vmatpush.msra.mxu0 0.0
    %1541 = vmatpush.msra.mxu0 %v1384
    %1542 = vmatmul.f32.gmra.mxu0 %v1367
    %v1543 = vpop.f32.mrf.mxu0
    %v1544 = vadd.f32 0.0, %v1543
    %1545 = vdwg.mxu0
    %1546 = vst [vmem:[#allocation1] ss:$2 sm:$0xff] %v1342
    %s1547 = scalar_lea.vmem [#allocation1], 16
    %1548 = vst [vmem:[%s1547] ss:$2 sm:$0xff] %v1343
    %s1549 = scalar_lea.vmem [#allocation1], 32
    %1550 = vst [vmem:[%s1549] ss:$2 sm:$0xff] %v1344
    %s1551 = scalar_lea.vmem [#allocation1], 48
    %1552 = vst [vmem:[%s1551] ss:$2 sm:$0xff] %v1345
    %v1553 = vld.sshfl [vmem:[#allocation1] sm:$0xff pattern:$0x75316420]
    %v1554 = vld.sshfl [vmem:[#allocation1 + $0x8] sm:$0xff pattern:$0x75316420]
    %v1555 = vld.sshfl [vmem:[#allocation1 + $0x10] sm:$0xff pattern:$0x75316420]
    %v1556 = vld.sshfl [vmem:[#allocation1 + $0x18] sm:$0xff pattern:$0x75316420]
    %v1557 = vld.sshfl [vmem:[#allocation1 + $0x20] sm:$0xff pattern:$0x75316420]
    %v1558 = vld.sshfl [vmem:[#allocation1 + $0x28] sm:$0xff pattern:$0x75316420]
    %v1559 = vld.sshfl [vmem:[#allocation1 + $0x30] sm:$0xff pattern:$0x75316420]
    %v1560 = vld.sshfl [vmem:[#allocation1 + $0x38] sm:$0xff pattern:$0x75316420]
    %v1562 = vsel %vm1365, %v1341, 0
    %v1564 = vsel %vm1369, %v1553, 0
    %v1566 = vsel %vm1369, %v1554, 0
    %v1568 = vsel %vm1369, %v1555, 0
    %v1570 = vsel %vm1369, %v1556, 0
    %v1572 = vsel %vm1369, %v1557, 0
    %v1574 = vsel %vm1369, %v1558, 0
    %v1576 = vsel %vm1369, %v1559, 0
    %v1578 = vsel %vm1369, %v1560, 0
    %1580 = vmatpush.msra.mxu0 0.0
    %1581 = vmatpush.msra.mxu0 0.0
    %1582 = vmatpush.msra.mxu0 0.0
    %1583 = vmatpush.msra.mxu0 0.0
    %1584 = vmatpush.msra.mxu0 0.0
    %1585 = vmatpush.msra.mxu0 0.0
    %1586 = vmatpush.msra.mxu0 0.0
    %1587 = vmatpush.msra.mxu0 0.0
    %1588 = vmatpush.msra.mxu0 0.0
    %1589 = vmatpush.msra.mxu0 0.0
    %1590 = vmatpush.msra.mxu0 0.0
    %1591 = vmatpush.msra.mxu0 0.0
    %1592 = vmatpush.msra.mxu0 0.0
    %1593 = vmatpush.msra.mxu0 0.0
    %1594 = vmatpush.msra.mxu0 0.0
    %1595 = vmatpush.msra.mxu0 %v1564
    %1596 = vmatmul.f32.gmra.mxu0 %v1562
    %v1597 = vpop.f32.mrf.mxu0
    %v1598 = vadd.f32 0.0, %v1597
    %1599 = vdwg.mxu0
    %1600 = vmatpush.msra.mxu0 0.0
    %1601 = vmatpush.msra.mxu0 0.0
    %1602 = vmatpush.msra.mxu0 0.0
    %1603 = vmatpush.msra.mxu0 0.0
    %1604 = vmatpush.msra.mxu0 0.0
    %1605 = vmatpush.msra.mxu0 0.0
    %1606 = vmatpush.msra.mxu0 0.0
    %1607 = vmatpush.msra.mxu0 0.0
    %1608 = vmatpush.msra.mxu0 0.0
    %1609 = vmatpush.msra.mxu0 0.0
    %1610 = vmatpush.msra.mxu0 0.0
    %1611 = vmatpush.msra.mxu0 0.0
    %1612 = vmatpush.msra.mxu0 0.0
    %1613 = vmatpush.msra.mxu0 0.0
    %1614 = vmatpush.msra.mxu0 0.0
    %1615 = vmatpush.msra.mxu0 %v1566
    %1616 = vmatmul.f32.gmra.mxu0 %v1562
    %v1617 = vpop.f32.mrf.mxu0
    %v1618 = vadd.f32 0.0, %v1617
    %1619 = vdwg.mxu0
    %1620 = vmatpush.msra.mxu0 0.0
    %1621 = vmatpush.msra.mxu0 0.0
    %1622 = vmatpush.msra.mxu0 0.0
    %1623 = vmatpush.msra.mxu0 0.0
    %1624 = vmatpush.msra.mxu0 0.0
    %1625 = vmatpush.msra.mxu0 0.0
    %1626 = vmatpush.msra.mxu0 0.0
    %1627 = vmatpush.msra.mxu0 0.0
    %1628 = vmatpush.msra.mxu0 0.0
    %1629 = vmatpush.msra.mxu0 0.0
    %1630 = vmatpush.msra.mxu0 0.0
    %1631 = vmatpush.msra.mxu0 0.0
    %1632 = vmatpush.msra.mxu0 0.0
    %1633 = vmatpush.msra.mxu0 0.0
    %1634 = vmatpush.msra.mxu0 0.0
    %1635 = vmatpush.msra.mxu0 %v1568
    %1636 = vmatmul.f32.gmra.mxu0 %v1562
    %v1637 = vpop.f32.mrf.mxu0
    %v1638 = vadd.f32 0.0, %v1637
    %1639 = vdwg.mxu0
    %1640 = vmatpush.msra.mxu0 0.0
    %1641 = vmatpush.msra.mxu0 0.0
    %1642 = vmatpush.msra.mxu0 0.0
    %1643 = vmatpush.msra.mxu0 0.0
    %1644 = vmatpush.msra.mxu0 0.0
    %1645 = vmatpush.msra.mxu0 0.0
    %1646 = vmatpush.msra.mxu0 0.0
    %1647 = vmatpush.msra.mxu0 0.0
    %1648 = vmatpush.msra.mxu0 0.0
    %1649 = vmatpush.msra.mxu0 0.0
    %1650 = vmatpush.msra.mxu0 0.0
    %1651 = vmatpush.msra.mxu0 0.0
    %1652 = vmatpush.msra.mxu0 0.0
    %1653 = vmatpush.msra.mxu0 0.0
    %1654 = vmatpush.msra.mxu0 0.0
    %1655 = vmatpush.msra.mxu0 %v1570
    %1656 = vmatmul.f32.gmra.mxu0 %v1562
    %v1657 = vpop.f32.mrf.mxu0
    %v1658 = vadd.f32 0.0, %v1657
    %1659 = vdwg.mxu0
    %1660 = vmatpush.msra.mxu0 0.0
    %1661 = vmatpush.msra.mxu0 0.0
    %1662 = vmatpush.msra.mxu0 0.0
    %1663 = vmatpush.msra.mxu0 0.0
    %1664 = vmatpush.msra.mxu0 0.0
    %1665 = vmatpush.msra.mxu0 0.0
    %1666 = vmatpush.msra.mxu0 0.0
    %1667 = vmatpush.msra.mxu0 0.0
    %1668 = vmatpush.msra.mxu0 0.0
    %1669 = vmatpush.msra.mxu0 0.0
    %1670 = vmatpush.msra.mxu0 0.0
    %1671 = vmatpush.msra.mxu0 0.0
    %1672 = vmatpush.msra.mxu0 0.0
    %1673 = vmatpush.msra.mxu0 0.0
    %1674 = vmatpush.msra.mxu0 0.0
    %1675 = vmatpush.msra.mxu0 %v1572
    %1676 = vmatmul.f32.gmra.mxu0 %v1562
    %v1677 = vpop.f32.mrf.mxu0
    %v1678 = vadd.f32 0.0, %v1677
    %1679 = vdwg.mxu0
    %1680 = vmatpush.msra.mxu0 0.0
    %1681 = vmatpush.msra.mxu0 0.0
    %1682 = vmatpush.msra.mxu0 0.0
    %1683 = vmatpush.msra.mxu0 0.0
    %1684 = vmatpush.msra.mxu0 0.0
    %1685 = vmatpush.msra.mxu0 0.0
    %1686 = vmatpush.msra.mxu0 0.0
    %1687 = vmatpush.msra.mxu0 0.0
    %1688 = vmatpush.msra.mxu0 0.0
    %1689 = vmatpush.msra.mxu0 0.0
    %1690 = vmatpush.msra.mxu0 0.0
    %1691 = vmatpush.msra.mxu0 0.0
    %1692 = vmatpush.msra.mxu0 0.0
    %1693 = vmatpush.msra.mxu0 0.0
    %1694 = vmatpush.msra.mxu0 0.0
    %1695 = vmatpush.msra.mxu0 %v1574
    %1696 = vmatmul.f32.gmra.mxu0 %v1562
    %v1697 = vpop.f32.mrf.mxu0
    %v1698 = vadd.f32 0.0, %v1697
    %1699 = vdwg.mxu0
    %1700 = vmatpush.msra.mxu0 0.0
    %1701 = vmatpush.msra.mxu0 0.0
    %1702 = vmatpush.msra.mxu0 0.0
    %1703 = vmatpush.msra.mxu0 0.0
    %1704 = vmatpush.msra.mxu0 0.0
    %1705 = vmatpush.msra.mxu0 0.0
    %1706 = vmatpush.msra.mxu0 0.0
    %1707 = vmatpush.msra.mxu0 0.0
    %1708 = vmatpush.msra.mxu0 0.0
    %1709 = vmatpush.msra.mxu0 0.0
    %1710 = vmatpush.msra.mxu0 0.0
    %1711 = vmatpush.msra.mxu0 0.0
    %1712 = vmatpush.msra.mxu0 0.0
    %1713 = vmatpush.msra.mxu0 0.0
    %1714 = vmatpush.msra.mxu0 0.0
    %1715 = vmatpush.msra.mxu0 %v1576
    %1716 = vmatmul.f32.gmra.mxu0 %v1562
    %v1717 = vpop.f32.mrf.mxu0
    %v1718 = vadd.f32 0.0, %v1717
    %1719 = vdwg.mxu0
    %1720 = vmatpush.msra.mxu0 0.0
    %1721 = vmatpush.msra.mxu0 0.0
    %1722 = vmatpush.msra.mxu0 0.0
    %1723 = vmatpush.msra.mxu0 0.0
    %1724 = vmatpush.msra.mxu0 0.0
    %1725 = vmatpush.msra.mxu0 0.0
    %1726 = vmatpush.msra.mxu0 0.0
    %1727 = vmatpush.msra.mxu0 0.0
    %1728 = vmatpush.msra.mxu0 0.0
    %1729 = vmatpush.msra.mxu0 0.0
    %1730 = vmatpush.msra.mxu0 0.0
    %1731 = vmatpush.msra.mxu0 0.0
    %1732 = vmatpush.msra.mxu0 0.0
    %1733 = vmatpush.msra.mxu0 0.0
    %1734 = vmatpush.msra.mxu0 0.0
    %1735 = vmatpush.msra.mxu0 %v1578
    %1736 = vmatmul.f32.gmra.mxu0 %v1562
    %v1737 = vpop.f32.mrf.mxu0
    %v1738 = vadd.f32 0.0, %v1737
    %1739 = vdwg.mxu0
    %v1740 = vperm.slane %v1404, 0
    %v1741 = vperm.slane %v1424, 0
    %v1742 = vperm.slane %v1444, 0
    %v1743 = vperm.slane %v1464, 0
    %v1744 = vperm.slane %v1484, 0
    %v1745 = vperm.slane %v1504, 0
    %v1746 = vperm.slane %v1524, 0
    %v1747 = vperm.slane %v1544, 0
    %v1748 = vsub.f32 %v476, %v1740
    %v1749 = vsub.f32 %v516, %v1741
    %v1750 = vsub.f32 %v556, %v1742
    %v1751 = vsub.f32 %v596, %v1743
    %v1752 = vsub.f32 %v636, %v1744
    %v1753 = vsub.f32 %v676, %v1745
    %v1754 = vsub.f32 %v716, %v1746
    %v1755 = vsub.f32 %v756, %v1747
    %v1756 = vperm.slane %v1598, 0
    %v1757 = vperm.slane %v1618, 0
    %v1758 = vperm.slane %v1638, 0
    %v1759 = vperm.slane %v1658, 0
    %v1760 = vperm.slane %v1678, 0
    %v1761 = vperm.slane %v1698, 0
    %v1762 = vperm.slane %v1718, 0
    %v1763 = vperm.slane %v1738, 0
    %v1764 = vmul.f32 %v1748, %v1756
    %v1765 = vmul.f32 %v1749, %v1757
    %v1766 = vmul.f32 %v1750, %v1758
    %v1767 = vmul.f32 %v1751, %v1759
    %v1768 = vmul.f32 %v1752, %v1760
    %v1769 = vmul.f32 %v1753, %v1761
    %v1770 = vmul.f32 %v1754, %v1762
    %v1771 = vmul.f32 %v1755, %v1763
    %s1772 = sld [smem:[#allocation3]]
    %vm1773 = vcmp.ge.f32.partialorder %v1764, 0.0
    %vm1774 = vcmp.ge.f32.partialorder %v1765, 0.0
    %vm1775 = vcmp.ge.f32.partialorder %v1766, 0.0
    %vm1776 = vcmp.ge.f32.partialorder %v1767, 0.0
    %vm1777 = vcmp.ge.f32.partialorder %v1768, 0.0
    %vm1778 = vcmp.ge.f32.partialorder %v1769, 0.0
    %vm1779 = vcmp.ge.f32.partialorder %v1770, 0.0
    %vm1780 = vcmp.ge.f32.partialorder %v1771, 0.0
    %v1781 = vstv %s1772
    %v1782 = vmul.f32 %v1781, %v1764
    %v1783 = vmul.f32 %v1781, %v1765
    %v1784 = vmul.f32 %v1781, %v1766
    %v1785 = vmul.f32 %v1781, %v1767
    %v1786 = vmul.f32 %v1781, %v1768
    %v1787 = vmul.f32 %v1781, %v1769
    %v1788 = vmul.f32 %v1781, %v1770
    %v1789 = vmul.f32 %v1781, %v1771
    %v1790 = vsel %vm1773, %v1764, %v1782
    %v1791 = vsel %vm1774, %v1765, %v1783
    %v1792 = vsel %vm1775, %v1766, %v1784
    %v1793 = vsel %vm1776, %v1767, %v1785
    %v1794 = vsel %vm1777, %v1768, %v1786
    %v1795 = vsel %vm1778, %v1769, %v1787
    %v1796 = vsel %vm1779, %v1770, %v1788
    %v1797 = vsel %vm1780, %v1771, %v1789
    %v1806 = vrot.slane %v1791, 6
    %v1807 = vrot.slane %v1792, 4
    %v1808 = vrot.slane %v1793, 2
    %v1809 = vrot.slane %v1795, 6
    %v1810 = vrot.slane %v1796, 4
    %v1811 = vrot.slane %v1797, 2
    %v1812 = vsel %vm758, %v1790, %v1806
    %vm1813 = vcmask 1045508
    %v1814 = vsel %vm1813, %v1807, %v1808
    %v1815 = vsel %vm1369, %v1812, %v1814
    %v1816 = vsel %vm758, %v1794, %v1809
    %v1817 = vsel %vm1813, %v1810, %v1811
    %v1818 = vsel %vm1369, %v1816, %v1817
    %1821 = vst [vmem:[%s8] sm:$0xff] %v1815
    %1822 = vst [vmem:[%s8 + $0x8] sm:$0xff] %v1818
    // Predicated region
    $region58: #{_lambda_.1} parent=1 // pred_check
      _
    $region59: #{_lambda_.1} parent=1 // pred_check_branch
      %1824 = sbr.rel (0) target = $region61
    $region60: #{_lambda_.1} parent=1 // pred_region
      _
    $region61: #{_lambda_.1} parent=1 // pred_fallthru
      _
    // Predicated region
    $region62: #{_lambda_.1} parent=1 // pred_check
      _
    $region63: #{_lambda_.1} parent=1 // pred_check_branch
      %1826 = sbr.rel (0) target = $region65
    $region64: #{_lambda_.1} parent=1 // pred_region
      _
    $region65: #{_lambda_.1} parent=1 // pred_fallthru
      _
    %1827 = vsyncpa [#allocation5], 1
    %1828 = vsyncpa [#allocation7], 1
    %1829 = vsyncpa [#allocation10], 1
    %1830 = vsyncpa [#allocation13], 1

</llo_original>
